<compile_context>
chip_gen: v6e
topology: v6e:2x2x1
jax: 0.10.0
libtpu: 0.0.40
codegen_flags: <defaults>
</compile_context>

<pallas_src>
import functools

import jax
import jax.numpy as jnp
from jax import lax
from jax.experimental import pallas as pl
from jax.experimental.pallas import tpu as pltpu


def _round_up(x, m):
    return (x + m - 1) // m * m


# ---------------------------------------------------------------------------
# Pass 1 (stride-1 path): fused im2col + matmul, per-(n, do) output slab.
# ---------------------------------------------------------------------------
def _fused_conv_kernel(*refs, kh, kw, ho, wo, add_bias, emit_stats, fuse_relu):
    idx = 0
    x_ref = refs[idx]; idx += 1          # (1, Hp, Wp, Cin)        bf16
    w_ref = refs[idx]; idx += 1          # (kd*kh*kw, Cin, Cout)   bf16
    b_ref = None
    if add_bias:
        b_ref = refs[idx]; idx += 1      # (1, Cout)               f32
    y_ref = refs[idx]; idx += 1          # (1, Ho*Wo, Cout)
    stats_ref = None
    if emit_stats:
        stats_ref = refs[idx]; idx += 1  # (1, 2, Cout)            f32
    acc_ref = refs[idx]                  # (Ho*Wo, Cout)           f32 scratch

    t = pl.program_id(2)                 # depth tap (reduction axis)

    @pl.when(t == 0)
    def _():
        acc_ref[...] = jnp.zeros_like(acc_ref)

    khkw = kh * kw
    for th in range(kh):                 # static unrolled tap loops
        for tw in range(kw):
            patch = x_ref[0, th:th + ho, tw:tw + wo, :]      # (Ho, Wo, Cin)
            lhs = patch.reshape(ho * wo, patch.shape[-1])    # (Ho*Wo, Cin)
            rhs = w_ref[t * khkw + th * kw + tw]             # (Cin, Cout)
            acc_ref[...] += jnp.dot(lhs, rhs,
                                    preferred_element_type=jnp.float32)

    @pl.when(t == pl.num_programs(2) - 1)
    def _():
        acc = acc_ref[...]
        if add_bias:
            acc = acc + b_ref[...]
        if emit_stats:
            # Per-tile (sum, centered M2); every tile holds exactly Ho*Wo real
            # rows, so a Chan-style combine in the wrapper is exact and
            # avoids E[x^2]-E[x]^2 cancellation.
            s = jnp.sum(acc, axis=0, keepdims=True)          # (1, Cout)
            mu = s * (1.0 / (ho * wo))
            d = acc - mu
            stats_ref[0, 0:1, :] = s
            stats_ref[0, 1:2, :] = jnp.sum(d * d, axis=0, keepdims=True)
        if fuse_relu:
            acc = jnp.maximum(acc, 0.0)
        y_ref[0] = acc.astype(y_ref.dtype)


# ---------------------------------------------------------------------------
# Pass 2: elementwise scale/shift + ReLU (shared by both paths).
# ---------------------------------------------------------------------------
def _scale_shift_act_kernel(y_ref, scale_ref, shift_ref, o_ref, *, use_relu):
    y = y_ref[...].astype(jnp.float32) * scale_ref[...] + shift_ref[...]
    if use_relu:
        y = jnp.maximum(y, 0.0)
    o_ref[...] = y.astype(o_ref.dtype)


# ---------------------------------------------------------------------------
# Pass 1 (fallback, strided convs): tiled im2col matmul.
# ---------------------------------------------------------------------------
def _conv_mm_kernel(*refs, add_bias, emit_stats, fuse_relu):
    idx = 0
    p_ref = refs[idx]; idx += 1
    w_ref = refs[idx]; idx += 1
    b_ref = None
    if add_bias:
        b_ref = refs[idx]; idx += 1
    y_ref = refs[idx]; idx += 1
    stats_ref = None
    if emit_stats:
        stats_ref = refs[idx]; idx += 1
    acc_ref = refs[idx]

    k = pl.program_id(2)

    @pl.when(k == 0)
    def _():
        acc_ref[...] = jnp.zeros_like(acc_ref)

    acc_ref[...] += jnp.dot(p_ref[...], w_ref[...],
                            preferred_element_type=jnp.float32)

    @pl.when(k == pl.num_programs(2) - 1)
    def _():
        acc = acc_ref[...]
        if add_bias:
            acc = acc + b_ref[...]
        if emit_stats:
            # Zero-padded rows contribute exactly 0 to both sums.
            stats_ref[0, 0:1, :] = jnp.sum(acc, axis=0, keepdims=True)
            stats_ref[0, 1:2, :] = jnp.sum(acc * acc, axis=0, keepdims=True)
        if fuse_relu:
            acc = jnp.maximum(acc, 0.0)
        y_ref[...] = acc.astype(y_ref.dtype)


# ---------------------------------------------------------------------------
# Stride-1 path.
# ---------------------------------------------------------------------------
def _fused_path(x, weight, bias, gamma, beta, *, padding, use_batch_norm,
                use_bias, use_relu, eps):
    N, Cin, D, H, W = x.shape
    Cout, _, kd, kh, kw = weight.shape
    p = padding
    Dp, Hp, Wp = D + 2 * p, H + 2 * p, W + 2 * p
    Do, Ho, Wo = Dp - kd + 1, Hp - kh + 1, Wp - kw + 1
    ndo = N * Do
    howo = Ho * Wo
    M = ndo * howo
    T = kd * kh * kw

    # NDHWC, zero-padded spatially, bf16 for the MXU.
    # TODO(synk): keep NDHWC end-to-end when chaining Unit3D blocks so this
    # input relayout (and the final NCDHW one) disappears.
    x_cl = jnp.transpose(x, (0, 2, 3, 4, 1)).astype(jnp.bfloat16)
    xp = jnp.pad(x_cl, ((0, 0), (p, p), (p, p), (p, p), (0, 0)))
    xp = xp.reshape(N * Dp, Hp, Wp, Cin)

    # Weights as (kd*kh*kw, Cin, Cout), K-order == (td, th, tw, Cin).
    w_r = jnp.transpose(weight, (2, 3, 4, 1, 0)).reshape(T, Cin, Cout)
    w_r = w_r.astype(jnp.bfloat16)

    add_bias = use_bias and not use_batch_norm   # bias cancels under BN
    fuse_relu = use_relu and not use_batch_norm
    y_dtype = jnp.bfloat16 if use_batch_norm else jnp.float32

    in_arrays = [xp, w_r]
    in_specs = [
        pl.BlockSpec((1, Hp, Wp, Cin),
                     lambda n, d, t: (n * Dp + d + t, 0, 0, 0)),
        pl.BlockSpec((T, Cin, Cout), lambda n, d, t: (0, 0, 0)),
    ]
    if add_bias:
        in_arrays.append(bias.astype(jnp.float32).reshape(1, Cout))
        in_specs.append(pl.BlockSpec((1, Cout), lambda n, d, t: (0, 0)))

    out_shapes = [jax.ShapeDtypeStruct((ndo, howo, Cout), y_dtype)]
    out_specs = [pl.BlockSpec((1, howo, Cout),
                              lambda n, d, t: (n * Do + d, 0, 0))]
    if use_batch_norm:
        out_shapes.append(jax.ShapeDtypeStruct((ndo, 2, Cout), jnp.float32))
        out_specs.append(pl.BlockSpec((1, 2, Cout),
                                      lambda n, d, t: (n * Do + d, 0, 0)))

    kernel1 = functools.partial(_fused_conv_kernel, kh=kh, kw=kw, ho=Ho, wo=Wo,
                                add_bias=add_bias, emit_stats=use_batch_norm,
                                fuse_relu=fuse_relu)
    ybytes = 2 if use_batch_norm else 4
    res = pl.pallas_call(
        kernel1,
        out_shape=tuple(out_shapes) if use_batch_norm else out_shapes[0],
        grid=(N, Do, kd),
        in_specs=in_specs,
        out_specs=tuple(out_specs) if use_batch_norm else out_specs[0],
        scratch_shapes=[pltpu.VMEM((howo, Cout), jnp.float32)],
        compiler_params=pltpu.CompilerParams(
            dimension_semantics=("parallel", "parallel", "arbitrary"),
            vmem_limit_bytes=48 * 1024 * 1024),  # < v7x's 64 MiB physical
        cost_estimate=pl.CostEstimate(
            flops=2 * M * Cin * T * Cout,
            transcendentals=0,
            bytes_accessed=(ndo * kd * Hp * Wp * Cin * 2
                            + T * Cin * Cout * 2
                            + M * Cout * ybytes
                            + (ndo * 2 * Cout * 4 if use_batch_norm else 0))),
    )(*in_arrays)

    if not use_batch_norm:
        out = res.reshape(N, Do, Ho, Wo, Cout)
        return jnp.transpose(out, (0, 4, 1, 2, 3))

    y1, stats = res

    # Chan-style combination of per-tile (sum, centered M2) -> batch stats.
    sums = stats[:, 0, :]                        # (ndo, Cout)
    m2s = stats[:, 1, :]
    cnt = float(howo)
    mean = jnp.sum(sums, axis=0) / M             # (Cout,)
    mean_t = sums / cnt
    m2 = jnp.sum(m2s, axis=0) + cnt * jnp.sum(jnp.square(mean_t - mean), axis=0)
    var = jnp.maximum(m2 / M, 0.0)
    inv = lax.rsqrt(var + eps)
    scale_c = gamma.astype(jnp.float32) * inv
    shift_c = beta.astype(jnp.float32) - mean * scale_c
    # TODO(synk): running_mean/running_var momentum update (training-state side
    # effect of BatchNorm3d) is not modeled; the forward output is unaffected.

    # ---- pass 2: lane-dense BN apply + ReLU ----
    L = howo * Cout
    scale_row = jnp.tile(scale_c, howo).reshape(1, L)
    shift_row = jnp.tile(shift_c, howo).reshape(1, L)

    rb = 0
    for cand in (64, 32, 16, 8):
        if ndo % cand == 0 and cand * L * 12 <= (8 << 20):
            rb = cand
            break

    kernel2 = functools.partial(_scale_shift_act_kernel, use_relu=use_relu)
    cost2 = pl.CostEstimate(flops=2 * ndo * L, transcendentals=0,
                            bytes_accessed=ndo * L * 6 + 2 * L * 4)
    if rb:
        y2 = pl.pallas_call(
            kernel2,
            out_shape=jax.ShapeDtypeStruct((ndo, L), jnp.float32),
            grid=(ndo // rb,),
            in_specs=[pl.BlockSpec((rb, L), lambda i: (i, 0)),
                      pl.BlockSpec((1, L), lambda i: (0, 0)),
                      pl.BlockSpec((1, L), lambda i: (0, 0))],
            out_specs=pl.BlockSpec((rb, L), lambda i: (i, 0)),
            compiler_params=pltpu.CompilerParams(
                dimension_semantics=("parallel",)),
            cost_estimate=cost2,
        )(y1.reshape(ndo, L), scale_row, shift_row)
    else:
        # ndo not a multiple of 8: one (1, 1, L) row per step (block dims equal
        # the full array dims, so this is valid for any ndo and still lane-dense).
        y2 = pl.pallas_call(
            kernel2,
            out_shape=jax.ShapeDtypeStruct((ndo, 1, L), jnp.float32),
            grid=(ndo,),
            in_specs=[pl.BlockSpec((1, 1, L), lambda i: (i, 0, 0)),
                      pl.BlockSpec((1, L), lambda i: (0, 0)),
                      pl.BlockSpec((1, L), lambda i: (0, 0))],
            out_specs=pl.BlockSpec((1, 1, L), lambda i: (i, 0, 0)),
            compiler_params=pltpu.CompilerParams(
                dimension_semantics=("parallel",)),
            cost_estimate=cost2,
        )(y1.reshape(ndo, 1, L), scale_row, shift_row)

    out = y2.reshape(N, Do, Ho, Wo, Cout)
    # TODO(synk): fold this NCDHW relayout into the consumer (or stay NDHWC)
    # to save one output-sized HBM round trip.
    return jnp.transpose(out, (0, 4, 1, 2, 3))


# ---------------------------------------------------------------------------
# Strided-conv fallback: tiled im2col matmul (previous, known-working path).
# ---------------------------------------------------------------------------
def _im2col_path(x, weight, bias, gamma, beta, *, stride, padding,
                 use_batch_norm, use_bias, use_relu, eps):
    N, Cin, D, H, W = x.shape
    Cout, _, kd, kh, kw = weight.shape
    sd, sh, sw = stride
    p = padding

    Do = (D + 2 * p - kd) // sd + 1
    Ho = (H + 2 * p - kh) // sh + 1
    Wo = (W + 2 * p - kw) // sw + 1
    M = N * Do * Ho * Wo
    K = Cin * kd * kh * kw

    x_cl = jnp.transpose(x, (0, 2, 3, 4, 1)).astype(jnp.bfloat16)
    xp = jnp.pad(x_cl, ((0, 0), (p, p), (p, p), (p, p), (0, 0)))
    taps = []
    for ti in range(kd):
        for tj in range(kh):
            for tk in range(kw):
                taps.append(xp[:,
                               ti:ti + (Do - 1) * sd + 1:sd,
                               tj:tj + (Ho - 1) * sh + 1:sh,
                               tk:tk + (Wo - 1) * sw + 1:sw, :])
    P = jnp.stack(taps, axis=4).reshape(M, K)
    Wm = jnp.transpose(weight, (2, 3, 4, 1, 0)).reshape(K, Cout)
    Wm = Wm.astype(jnp.bfloat16)

    TM = 256
    TK = 256                       # K is padded up to a TK multiple
    Cpad = _round_up(Cout, 128)
    Kpad = _round_up(K, TK)
    Mpad = _round_up(M, TM)
    TN = Cpad if Cpad <= 512 else (256 if Cpad % 256 == 0 else 128)

    P = jnp.pad(P, ((0, Mpad - M), (0, Kpad - K)))
    Wm = jnp.pad(Wm, ((0, Kpad - K), (0, Cpad - Cout)))

    add_bias = use_bias and not use_batch_norm
    fuse_relu = use_relu and not use_batch_norm
    y_dtype = jnp.bfloat16 if use_batch_norm else jnp.float32

    m_tiles = Mpad // TM
    grid = (m_tiles, Cpad // TN, Kpad // TK)

    in_arrays = [P, Wm]
    in_specs = [pl.BlockSpec((TM, TK), lambda i, j, k: (i, k)),
                pl.BlockSpec((TK, TN), lambda i, j, k: (k, j))]
    if add_bias:
        b2 = jnp.pad(bias.astype(jnp.float32), (0, Cpad - Cout)).reshape(1, Cpad)
        in_arrays.append(b2)
        in_specs.append(pl.BlockSpec((1, TN), lambda i, j, k: (0, j)))

    out_shapes = [jax.ShapeDtypeStruct((Mpad, Cpad), y_dtype)]
    out_specs = [pl.BlockSpec((TM, TN), lambda i, j, k: (i, j))]
    if use_batch_norm:
        out_shapes.append(jax.ShapeDtypeStruct((m_tiles, 2, Cpad), jnp.float32))
        out_specs.append(pl.BlockSpec((1, 2, TN), lambda i, j, k: (i, 0, j)))

    kernel1 = functools.partial(_conv_mm_kernel, add_bias=add_bias,
                                emit_stats=use_batch_norm, fuse_relu=fuse_relu)
    res = pl.pallas_call(
        kernel1,
        out_shape=tuple(out_shapes) if use_batch_norm else out_shapes[0],
        grid_spec=pltpu.PrefetchScalarGridSpec(
            num_scalar_prefetch=0,
            grid=grid,
            in_specs=in_specs,
            out_specs=tuple(out_specs) if use_batch_norm else out_specs[0],
            scratch_shapes=[pltpu.VMEM((TM, TN), jnp.float32)]),
        compiler_params=pltpu.CompilerParams(
            dimension_semantics=("parallel", "parallel", "arbitrary"),
            vmem_limit_bytes=48 * 1024 * 1024),
        cost_estimate=pl.CostEstimate(
            flops=2 * Mpad * Kpad * Cpad,
            transcendentals=0,
            bytes_accessed=(Mpad * Kpad * (Cpad // TN) + Kpad * Cpad) * 2
                           + Mpad * Cpad * (2 if use_batch_norm else 4)
                           + m_tiles * 2 * Cpad * 4),
    )(*in_arrays)

    if not use_batch_norm:
        out = res[:M, :Cout].reshape(N, Do, Ho, Wo, Cout)
        return jnp.transpose(out, (0, 4, 1, 2, 3))

    y1, stats = res
    # TODO(synk): this rare strided path still uses E[x^2]-E[x]^2 (f32); the
    # stride-1 path uses the cancellation-robust centered form.
    sums = jnp.sum(stats[:, 0, :], axis=0)
    sumsq = jnp.sum(stats[:, 1, :], axis=0)
    mean = sums / M
    var = jnp.maximum(sumsq / M - mean * mean, 0.0)
    inv = lax.rsqrt(var + eps)
    gamma_p = jnp.pad(gamma.astype(jnp.float32), (0, Cpad - Cout))
    beta_p = jnp.pad(beta.astype(jnp.float32), (0, Cpad - Cout))
    scale = (gamma_p * inv).reshape(1, Cpad)
    shift = (beta_p - mean * gamma_p * inv).reshape(1, Cpad)

    kernel2 = functools.partial(_scale_shift_act_kernel, use_relu=use_relu)
    y2 = pl.pallas_call(
        kernel2,
        out_shape=jax.ShapeDtypeStruct((Mpad, Cpad), jnp.float32),
        grid=(m_tiles, Cpad // TN),
        in_specs=[pl.BlockSpec((TM, TN), lambda i, j: (i, j)),
                  pl.BlockSpec((1, TN), lambda i, j: (0, j)),
                  pl.BlockSpec((1, TN), lambda i, j: (0, j))],
        out_specs=pl.BlockSpec((TM, TN), lambda i, j: (i, j)),
        compiler_params=pltpu.CompilerParams(
            dimension_semantics=("parallel", "parallel")),
        cost_estimate=pl.CostEstimate(
            flops=2 * Mpad * Cpad, transcendentals=0,
            bytes_accessed=Mpad * Cpad * 6 + 2 * Cpad * 4),
    )(y1, scale, shift)

    out = y2[:M, :Cout].reshape(N, Do, Ho, Wo, Cout)
    return jnp.transpose(out, (0, 4, 1, 2, 3))


# ---------------------------------------------------------------------------
# Public entry point (training-mode BN forward, matching Unit3D.forward).
# ---------------------------------------------------------------------------
@functools.partial(jax.jit,
                   static_argnames=("stride", "padding", "use_batch_norm",
                                    "use_bias", "use_relu", "eps"))
def unit3d_forward(x, weight, bias, gamma, beta, *,
                   stride=(1, 1, 1), padding=0,
                   use_batch_norm=True, use_bias=False, use_relu=True,
                   eps=1e-3):
    """x: [N, Cin, D, H, W] (NCDHW), weight: [Cout, Cin, kd, kh, kw]."""
    if tuple(stride) == (1, 1, 1):
        return _fused_path(x, weight, bias, gamma, beta, padding=padding,
                           use_batch_norm=use_batch_norm, use_bias=use_bias,
                           use_relu=use_relu, eps=eps)
    return _im2col_path(x, weight, bias, gamma, beta, stride=tuple(stride),
                        padding=padding, use_batch_norm=use_batch_norm,
                        use_bias=use_bias, use_relu=use_relu, eps=eps)


def unit3d_reference(x, weight, bias, gamma, beta, *,
                     stride, padding, use_batch_norm, use_bias, eps):
    y = lax.conv_general_dilated(
        x.astype(jnp.float32), weight.astype(jnp.float32),
        window_strides=stride,
        padding=[(padding, padding)] * 3,
        dimension_numbers=('NCDHW', 'OIDHW', 'NCDHW'))
    if use_bias:
        y = y + bias.reshape(1, -1, 1, 1, 1)
    if use_batch_norm:
        mean = jnp.mean(y, axis=(0, 2, 3, 4), keepdims=True)
        var = jnp.mean(jnp.square(y - mean), axis=(0, 2, 3, 4), keepdims=True)
        y = ((y - mean) * lax.rsqrt(var + eps)
             * gamma.reshape(1, -1, 1, 1, 1) + beta.reshape(1, -1, 1, 1, 1))
    return jnp.maximum(y, 0.0)


if __name__ == "__main__":
    # Unit3D(in_channels=4, output_channels=8, kernel_shape=(3,3,3),
    #        stride=(1,1,1), padding=1, use_batch_norm=True, use_bias=False)
    in_ch, out_ch = 4, 8
    ksz = (3, 3, 3)
    stride = (1, 1, 1)
    padding = 1

    key = jax.random.PRNGKey(0)
    kx, kw_, kg, kb = jax.random.split(key, 4)
    x = jax.random.normal(kx, (2, in_ch, 4, 8, 8), dtype=jnp.float32)
    weight = 0.1 * jax.random.normal(kw_, (out_ch, in_ch) + ksz,
                                     dtype=jnp.float32)
    bias = jnp.zeros((out_ch,), dtype=jnp.float32)          # use_bias=False
    gamma = 1.0 + 0.1 * jax.random.normal(kg, (out_ch,), dtype=jnp.float32)
    beta = 0.05 * jax.random.normal(kb, (out_ch,), dtype=jnp.float32)

    y = unit3d_forward(x, weight, bias, gamma, beta,
                       stride=stride, padding=padding,
                       use_batch_norm=True, use_bias=False, use_relu=True,
                       eps=1e-3)
    y = jax.block_until_ready(y)

    y_ref = unit3d_reference(x, weight, bias, gamma, beta,
                             stride=stride, padding=padding,
                             use_batch_norm=True, use_bias=False, eps=1e-3)
    assert y.shape == y_ref.shape == (2, out_ch, 4, 8, 8)
    # bf16 MXU operands / bf16 intermediate (f32 accumulate & stats) ->
    # compare with bf16-level tolerance.
    assert jnp.allclose(y, y_ref, atol=2e-2, rtol=2e-2), \
        float(jnp.max(jnp.abs(y - y_ref)))
    print("KERNEL_OK")
</pallas_src>

<mosaic_0001>
module attributes {stable_mosaic.version = 11 : i64} {
  func.func @_fused_conv_kernel(%arg0: i32, %arg1: i32, %arg2: i32, %arg3: memref<1x10x10x4xbf16, #tpu.memory_space<vmem>>, %arg4: memref<27x4x8xbf16, #tpu.memory_space<vmem>>, %arg5: memref<1x64x8xbf16, #tpu.memory_space<vmem>>, %arg6: memref<1x2x8xf32, #tpu.memory_space<vmem>>, %arg7: memref<64x8xf32, #tpu.memory_space<vmem>>) attributes {dimension_semantics = [#tpu.dimension_semantics<parallel>, #tpu.dimension_semantics<parallel>, #tpu.dimension_semantics<arbitrary>], iteration_bounds = array<i64: 2, 4, 3>, scalar_prefetch = 0 : i64, scratch_operands = 1 : i64, tpu.core_type = #tpu.core_type<tc>, window_params = [{transform_indices = @transform_0, window_bounds = array<i64: 1, 10, 10, 4>}, {pipeline_mode = #tpu.pipeline_mode<synchronous>, transform_indices = @transform_1, window_bounds = array<i64: 27, 4, 8>}, {transform_indices = @transform_2, window_bounds = array<i64: 1, 64, 8>}, {transform_indices = @transform_3, window_bounds = array<i64: 1, 2, 8>}]} {
    %c0_i32 = arith.constant 0 : i32
    %0 = arith.cmpi eq, %arg2, %c0_i32 : i32
    %1 = arith.extui %0 : i1 to i32
    %c0_i32_0 = arith.constant 0 : i32
    %2 = arith.cmpi ne, %1, %c0_i32_0 : i32
    scf.if %2 {
      %cst_120 = arith.constant 0.000000e+00 : f32
      %123 = vector.broadcast %cst_120 : f32 to vector<64x8xf32>
      %c0_121 = arith.constant 0 : index
      %c0_122 = arith.constant 0 : index
      %124 = vector.load %arg7[%c0_121, %c0_122] : memref<64x8xf32, #tpu.memory_space<vmem>>, vector<64x8xf32>
      tpu.vector_store %arg7[%c0_121, %c0_122], %123 {strides = array<i32>} : memref<64x8xf32, #tpu.memory_space<vmem>>, vector<64x8xf32>,
    } else {
    }
    %c0 = arith.constant 0 : index
    %c0_1 = arith.constant 0 : index
    %c0_2 = arith.constant 0 : index
    %c0_3 = arith.constant 0 : index
    %3 = vector.load %arg3[%c0, %c0_1, %c0_2, %c0_3] : memref<1x10x10x4xbf16, #tpu.memory_space<vmem>>, vector<1x8x8x4xbf16>
    %4 = vector.shape_cast %3 : vector<1x8x8x4xbf16> to vector<8x8x4xbf16>
    %5 = vector.shape_cast %4 : vector<8x8x4xbf16> to vector<64x4xbf16>
    %c9_i32 = arith.constant 9 : i32
    %6 = arith.muli %arg2, %c9_i32 : i32
    %c0_i32_4 = arith.constant 0 : i32
    %7 = arith.addi %6, %c0_i32_4 : i32
    %c0_i32_5 = arith.constant 0 : i32
    %8 = arith.addi %7, %c0_i32_5 : i32
    %9 = arith.index_cast %8 : i32 to index
    %c0_6 = arith.constant 0 : index
    %c0_7 = arith.constant 0 : index
    %10 = vector.load %arg4[%9, %c0_6, %c0_7] : memref<27x4x8xbf16, #tpu.memory_space<vmem>>, vector<1x4x8xbf16>
    %11 = vector.shape_cast %10 : vector<1x4x8xbf16> to vector<4x8xbf16>
    %c0_8 = arith.constant 0 : index
    %c0_9 = arith.constant 0 : index
    %12 = vector.load %arg7[%c0_8, %c0_9] : memref<64x8xf32, #tpu.memory_space<vmem>>, vector<64x8xf32>
    %cst = arith.constant dense<0.000000e+00> : vector<64x8xf32>
    %13 = tpu.matmul %5, %11, %cst {dimension_numbers = #tpu.dot_dimension_numbers<[1], [0], [0], [1], [0, 0, 1, 1], [], []>} : vector<64x4xbf16>, vector<4x8xbf16>, vector<64x8xf32> -> vector<64x8xf32>
    %14 = arith.addf %12, %13 : vector<64x8xf32>
    %c0_10 = arith.constant 0 : index
    %c0_11 = arith.constant 0 : index
    %15 = vector.load %arg7[%c0_10, %c0_11] : memref<64x8xf32, #tpu.memory_space<vmem>>, vector<64x8xf32>
    tpu.vector_store %arg7[%c0_10, %c0_11], %14 {strides = array<i32>} : memref<64x8xf32, #tpu.memory_space<vmem>>, vector<64x8xf32>,
    %c0_12 = arith.constant 0 : index
    %c0_13 = arith.constant 0 : index
    %c1 = arith.constant 1 : index
    %c0_14 = arith.constant 0 : index
    %16 = vector.load %arg3[%c0_12, %c0_13, %c1, %c0_14] : memref<1x10x10x4xbf16, #tpu.memory_space<vmem>>, vector<1x8x8x4xbf16>
    %17 = vector.shape_cast %16 : vector<1x8x8x4xbf16> to vector<8x8x4xbf16>
    %18 = vector.shape_cast %17 : vector<8x8x4xbf16> to vector<64x4xbf16>
    %c9_i32_15 = arith.constant 9 : i32
    %19 = arith.muli %arg2, %c9_i32_15 : i32
    %c0_i32_16 = arith.constant 0 : i32
    %20 = arith.addi %19, %c0_i32_16 : i32
    %c1_i32 = arith.constant 1 : i32
    %21 = arith.addi %20, %c1_i32 : i32
    %22 = arith.index_cast %21 : i32 to index
    %c0_17 = arith.constant 0 : index
    %c0_18 = arith.constant 0 : index
    %23 = vector.load %arg4[%22, %c0_17, %c0_18] : memref<27x4x8xbf16, #tpu.memory_space<vmem>>, vector<1x4x8xbf16>
    %24 = vector.shape_cast %23 : vector<1x4x8xbf16> to vector<4x8xbf16>
    %c0_19 = arith.constant 0 : index
    %c0_20 = arith.constant 0 : index
    %25 = vector.load %arg7[%c0_19, %c0_20] : memref<64x8xf32, #tpu.memory_space<vmem>>, vector<64x8xf32>
    %cst_21 = arith.constant dense<0.000000e+00> : vector<64x8xf32>
    %26 = tpu.matmul %18, %24, %cst_21 {dimension_numbers = #tpu.dot_dimension_numbers<[1], [0], [0], [1], [0, 0, 1, 1], [], []>} : vector<64x4xbf16>, vector<4x8xbf16>, vector<64x8xf32> -> vector<64x8xf32>
    %27 = arith.addf %25, %26 : vector<64x8xf32>
    %c0_22 = arith.constant 0 : index
    %c0_23 = arith.constant 0 : index
    %28 = vector.load %arg7[%c0_22, %c0_23] : memref<64x8xf32, #tpu.memory_space<vmem>>, vector<64x8xf32>
    tpu.vector_store %arg7[%c0_22, %c0_23], %27 {strides = array<i32>} : memref<64x8xf32, #tpu.memory_space<vmem>>, vector<64x8xf32>,
    %c0_24 = arith.constant 0 : index
    %c0_25 = arith.constant 0 : index
    %c2 = arith.constant 2 : index
    %c0_26 = arith.constant 0 : index
    %29 = vector.load %arg3[%c0_24, %c0_25, %c2, %c0_26] : memref<1x10x10x4xbf16, #tpu.memory_space<vmem>>, vector<1x8x8x4xbf16>
    %30 = vector.shape_cast %29 : vector<1x8x8x4xbf16> to vector<8x8x4xbf16>
    %31 = vector.shape_cast %30 : vector<8x8x4xbf16> to vector<64x4xbf16>
    %c9_i32_27 = arith.constant 9 : i32
    %32 = arith.muli %arg2, %c9_i32_27 : i32
    %c0_i32_28 = arith.constant 0 : i32
    %33 = arith.addi %32, %c0_i32_28 : i32
    %c2_i32 = arith.constant 2 : i32
    %34 = arith.addi %33, %c2_i32 : i32
    %35 = arith.index_cast %34 : i32 to index
    %c0_29 = arith.constant 0 : index
    %c0_30 = arith.constant 0 : index
    %36 = vector.load %arg4[%35, %c0_29, %c0_30] : memref<27x4x8xbf16, #tpu.memory_space<vmem>>, vector<1x4x8xbf16>
    %37 = vector.shape_cast %36 : vector<1x4x8xbf16> to vector<4x8xbf16>
    %c0_31 = arith.constant 0 : index
    %c0_32 = arith.constant 0 : index
    %38 = vector.load %arg7[%c0_31, %c0_32] : memref<64x8xf32, #tpu.memory_space<vmem>>, vector<64x8xf32>
    %cst_33 = arith.constant dense<0.000000e+00> : vector<64x8xf32>
    %39 = tpu.matmul %31, %37, %cst_33 {dimension_numbers = #tpu.dot_dimension_numbers<[1], [0], [0], [1], [0, 0, 1, 1], [], []>} : vector<64x4xbf16>, vector<4x8xbf16>, vector<64x8xf32> -> vector<64x8xf32>
    %40 = arith.addf %38, %39 : vector<64x8xf32>
    %c0_34 = arith.constant 0 : index
    %c0_35 = arith.constant 0 : index
    %41 = vector.load %arg7[%c0_34, %c0_35] : memref<64x8xf32, #tpu.memory_space<vmem>>, vector<64x8xf32>
    tpu.vector_store %arg7[%c0_34, %c0_35], %40 {strides = array<i32>} : memref<64x8xf32, #tpu.memory_space<vmem>>, vector<64x8xf32>,
    %c0_36 = arith.constant 0 : index
    %c1_37 = arith.constant 1 : index
    %c0_38 = arith.constant 0 : index
    %c0_39 = arith.constant 0 : index
    %42 = vector.load %arg3[%c0_36, %c1_37, %c0_38, %c0_39] : memref<1x10x10x4xbf16, #tpu.memory_space<vmem>>, vector<1x8x8x4xbf16>
    %43 = vector.shape_cast %42 : vector<1x8x8x4xbf16> to vector<8x8x4xbf16>
    %44 = vector.shape_cast %43 : vector<8x8x4xbf16> to vector<64x4xbf16>
    %c9_i32_40 = arith.constant 9 : i32
    %45 = arith.muli %arg2, %c9_i32_40 : i32
    %c3_i32 = arith.constant 3 : i32
    %46 = arith.addi %45, %c3_i32 : i32
    %c0_i32_41 = arith.constant 0 : i32
    %47 = arith.addi %46, %c0_i32_41 : i32
    %48 = arith.index_cast %47 : i32 to index
    %c0_42 = arith.constant 0 : index
    %c0_43 = arith.constant 0 : index
    %49 = vector.load %arg4[%48, %c0_42, %c0_43] : memref<27x4x8xbf16, #tpu.memory_space<vmem>>, vector<1x4x8xbf16>
    %50 = vector.shape_cast %49 : vector<1x4x8xbf16> to vector<4x8xbf16>
    %c0_44 = arith.constant 0 : index
    %c0_45 = arith.constant 0 : index
    %51 = vector.load %arg7[%c0_44, %c0_45] : memref<64x8xf32, #tpu.memory_space<vmem>>, vector<64x8xf32>
    %cst_46 = arith.constant dense<0.000000e+00> : vector<64x8xf32>
    %52 = tpu.matmul %44, %50, %cst_46 {dimension_numbers = #tpu.dot_dimension_numbers<[1], [0], [0], [1], [0, 0, 1, 1], [], []>} : vector<64x4xbf16>, vector<4x8xbf16>, vector<64x8xf32> -> vector<64x8xf32>
    %53 = arith.addf %51, %52 : vector<64x8xf32>
    %c0_47 = arith.constant 0 : index
    %c0_48 = arith.constant 0 : index
    %54 = vector.load %arg7[%c0_47, %c0_48] : memref<64x8xf32, #tpu.memory_space<vmem>>, vector<64x8xf32>
    tpu.vector_store %arg7[%c0_47, %c0_48], %53 {strides = array<i32>} : memref<64x8xf32, #tpu.memory_space<vmem>>, vector<64x8xf32>,
    %c0_49 = arith.constant 0 : index
    %c1_50 = arith.constant 1 : index
    %c1_51 = arith.constant 1 : index
    %c0_52 = arith.constant 0 : index
    %55 = vector.load %arg3[%c0_49, %c1_50, %c1_51, %c0_52] : memref<1x10x10x4xbf16, #tpu.memory_space<vmem>>, vector<1x8x8x4xbf16>
    %56 = vector.shape_cast %55 : vector<1x8x8x4xbf16> to vector<8x8x4xbf16>
    %57 = vector.shape_cast %56 : vector<8x8x4xbf16> to vector<64x4xbf16>
    %c9_i32_53 = arith.constant 9 : i32
    %58 = arith.muli %arg2, %c9_i32_53 : i32
    %c3_i32_54 = arith.constant 3 : i32
    %59 = arith.addi %58, %c3_i32_54 : i32
    %c1_i32_55 = arith.constant 1 : i32
    %60 = arith.addi %59, %c1_i32_55 : i32
    %61 = arith.index_cast %60 : i32 to index
    %c0_56 = arith.constant 0 : index
    %c0_57 = arith.constant 0 : index
    %62 = vector.load %arg4[%61, %c0_56, %c0_57] : memref<27x4x8xbf16, #tpu.memory_space<vmem>>, vector<1x4x8xbf16>
    %63 = vector.shape_cast %62 : vector<1x4x8xbf16> to vector<4x8xbf16>
    %c0_58 = arith.constant 0 : index
    %c0_59 = arith.constant 0 : index
    %64 = vector.load %arg7[%c0_58, %c0_59] : memref<64x8xf32, #tpu.memory_space<vmem>>, vector<64x8xf32>
    %cst_60 = arith.constant dense<0.000000e+00> : vector<64x8xf32>
    %65 = tpu.matmul %57, %63, %cst_60 {dimension_numbers = #tpu.dot_dimension_numbers<[1], [0], [0], [1], [0, 0, 1, 1], [], []>} : vector<64x4xbf16>, vector<4x8xbf16>, vector<64x8xf32> -> vector<64x8xf32>
    %66 = arith.addf %64, %65 : vector<64x8xf32>
    %c0_61 = arith.constant 0 : index
    %c0_62 = arith.constant 0 : index
    %67 = vector.load %arg7[%c0_61, %c0_62] : memref<64x8xf32, #tpu.memory_space<vmem>>, vector<64x8xf32>
    tpu.vector_store %arg7[%c0_61, %c0_62], %66 {strides = array<i32>} : memref<64x8xf32, #tpu.memory_space<vmem>>, vector<64x8xf32>,
    %c0_63 = arith.constant 0 : index
    %c1_64 = arith.constant 1 : index
    %c2_65 = arith.constant 2 : index
    %c0_66 = arith.constant 0 : index
    %68 = vector.load %arg3[%c0_63, %c1_64, %c2_65, %c0_66] : memref<1x10x10x4xbf16, #tpu.memory_space<vmem>>, vector<1x8x8x4xbf16>
    %69 = vector.shape_cast %68 : vector<1x8x8x4xbf16> to vector<8x8x4xbf16>
    %70 = vector.shape_cast %69 : vector<8x8x4xbf16> to vector<64x4xbf16>
    %c9_i32_67 = arith.constant 9 : i32
    %71 = arith.muli %arg2, %c9_i32_67 : i32
    %c3_i32_68 = arith.constant 3 : i32
    %72 = arith.addi %71, %c3_i32_68 : i32
    %c2_i32_69 = arith.constant 2 : i32
    %73 = arith.addi %72, %c2_i32_69 : i32
    %74 = arith.index_cast %73 : i32 to index
    %c0_70 = arith.constant 0 : index
    %c0_71 = arith.constant 0 : index
    %75 = vector.load %arg4[%74, %c0_70, %c0_71] : memref<27x4x8xbf16, #tpu.memory_space<vmem>>, vector<1x4x8xbf16>
    %76 = vector.shape_cast %75 : vector<1x4x8xbf16> to vector<4x8xbf16>
    %c0_72 = arith.constant 0 : index
    %c0_73 = arith.constant 0 : index
    %77 = vector.load %arg7[%c0_72, %c0_73] : memref<64x8xf32, #tpu.memory_space<vmem>>, vector<64x8xf32>
    %cst_74 = arith.constant dense<0.000000e+00> : vector<64x8xf32>
    %78 = tpu.matmul %70, %76, %cst_74 {dimension_numbers = #tpu.dot_dimension_numbers<[1], [0], [0], [1], [0, 0, 1, 1], [], []>} : vector<64x4xbf16>, vector<4x8xbf16>, vector<64x8xf32> -> vector<64x8xf32>
    %79 = arith.addf %77, %78 : vector<64x8xf32>
    %c0_75 = arith.constant 0 : index
    %c0_76 = arith.constant 0 : index
    %80 = vector.load %arg7[%c0_75, %c0_76] : memref<64x8xf32, #tpu.memory_space<vmem>>, vector<64x8xf32>
    tpu.vector_store %arg7[%c0_75, %c0_76], %79 {strides = array<i32>} : memref<64x8xf32, #tpu.memory_space<vmem>>, vector<64x8xf32>,
    %c0_77 = arith.constant 0 : index
    %c2_78 = arith.constant 2 : index
    %c0_79 = arith.constant 0 : index
    %c0_80 = arith.constant 0 : index
    %81 = vector.load %arg3[%c0_77, %c2_78, %c0_79, %c0_80] : memref<1x10x10x4xbf16, #tpu.memory_space<vmem>>, vector<1x8x8x4xbf16>
    %82 = vector.shape_cast %81 : vector<1x8x8x4xbf16> to vector<8x8x4xbf16>
    %83 = vector.shape_cast %82 : vector<8x8x4xbf16> to vector<64x4xbf16>
    %c9_i32_81 = arith.constant 9 : i32
    %84 = arith.muli %arg2, %c9_i32_81 : i32
    %c6_i32 = arith.constant 6 : i32
    %85 = arith.addi %84, %c6_i32 : i32
    %c0_i32_82 = arith.constant 0 : i32
    %86 = arith.addi %85, %c0_i32_82 : i32
    %87 = arith.index_cast %86 : i32 to index
    %c0_83 = arith.constant 0 : index
    %c0_84 = arith.constant 0 : index
    %88 = vector.load %arg4[%87, %c0_83, %c0_84] : memref<27x4x8xbf16, #tpu.memory_space<vmem>>, vector<1x4x8xbf16>
    %89 = vector.shape_cast %88 : vector<1x4x8xbf16> to vector<4x8xbf16>
    %c0_85 = arith.constant 0 : index
    %c0_86 = arith.constant 0 : index
    %90 = vector.load %arg7[%c0_85, %c0_86] : memref<64x8xf32, #tpu.memory_space<vmem>>, vector<64x8xf32>
    %cst_87 = arith.constant dense<0.000000e+00> : vector<64x8xf32>
    %91 = tpu.matmul %83, %89, %cst_87 {dimension_numbers = #tpu.dot_dimension_numbers<[1], [0], [0], [1], [0, 0, 1, 1], [], []>} : vector<64x4xbf16>, vector<4x8xbf16>, vector<64x8xf32> -> vector<64x8xf32>
    %92 = arith.addf %90, %91 : vector<64x8xf32>
    %c0_88 = arith.constant 0 : index
    %c0_89 = arith.constant 0 : index
    %93 = vector.load %arg7[%c0_88, %c0_89] : memref<64x8xf32, #tpu.memory_space<vmem>>, vector<64x8xf32>
    tpu.vector_store %arg7[%c0_88, %c0_89], %92 {strides = array<i32>} : memref<64x8xf32, #tpu.memory_space<vmem>>, vector<64x8xf32>,
    %c0_90 = arith.constant 0 : index
    %c2_91 = arith.constant 2 : index
    %c1_92 = arith.constant 1 : index
    %c0_93 = arith.constant 0 : index
    %94 = vector.load %arg3[%c0_90, %c2_91, %c1_92, %c0_93] : memref<1x10x10x4xbf16, #tpu.memory_space<vmem>>, vector<1x8x8x4xbf16>
    %95 = vector.shape_cast %94 : vector<1x8x8x4xbf16> to vector<8x8x4xbf16>
    %96 = vector.shape_cast %95 : vector<8x8x4xbf16> to vector<64x4xbf16>
    %c9_i32_94 = arith.constant 9 : i32
    %97 = arith.muli %arg2, %c9_i32_94 : i32
    %c6_i32_95 = arith.constant 6 : i32
    %98 = arith.addi %97, %c6_i32_95 : i32
    %c1_i32_96 = arith.constant 1 : i32
    %99 = arith.addi %98, %c1_i32_96 : i32
    %100 = arith.index_cast %99 : i32 to index
    %c0_97 = arith.constant 0 : index
    %c0_98 = arith.constant 0 : index
    %101 = vector.load %arg4[%100, %c0_97, %c0_98] : memref<27x4x8xbf16, #tpu.memory_space<vmem>>, vector<1x4x8xbf16>
    %102 = vector.shape_cast %101 : vector<1x4x8xbf16> to vector<4x8xbf16>
    %c0_99 = arith.constant 0 : index
    %c0_100 = arith.constant 0 : index
    %103 = vector.load %arg7[%c0_99, %c0_100] : memref<64x8xf32, #tpu.memory_space<vmem>>, vector<64x8xf32>
    %cst_101 = arith.constant dense<0.000000e+00> : vector<64x8xf32>
    %104 = tpu.matmul %96, %102, %cst_101 {dimension_numbers = #tpu.dot_dimension_numbers<[1], [0], [0], [1], [0, 0, 1, 1], [], []>} : vector<64x4xbf16>, vector<4x8xbf16>, vector<64x8xf32> -> vector<64x8xf32>
    %105 = arith.addf %103, %104 : vector<64x8xf32>
    %c0_102 = arith.constant 0 : index
    %c0_103 = arith.constant 0 : index
    %106 = vector.load %arg7[%c0_102, %c0_103] : memref<64x8xf32, #tpu.memory_space<vmem>>, vector<64x8xf32>
    tpu.vector_store %arg7[%c0_102, %c0_103], %105 {strides = array<i32>} : memref<64x8xf32, #tpu.memory_space<vmem>>, vector<64x8xf32>,
    %c0_104 = arith.constant 0 : index
    %c2_105 = arith.constant 2 : index
    %c2_106 = arith.constant 2 : index
    %c0_107 = arith.constant 0 : index
    %107 = vector.load %arg3[%c0_104, %c2_105, %c2_106, %c0_107] : memref<1x10x10x4xbf16, #tpu.memory_space<vmem>>, vector<1x8x8x4xbf16>
    %108 = vector.shape_cast %107 : vector<1x8x8x4xbf16> to vector<8x8x4xbf16>
    %109 = vector.shape_cast %108 : vector<8x8x4xbf16> to vector<64x4xbf16>
    %c9_i32_108 = arith.constant 9 : i32
    %110 = arith.muli %arg2, %c9_i32_108 : i32
    %c6_i32_109 = arith.constant 6 : i32
    %111 = arith.addi %110, %c6_i32_109 : i32
    %c2_i32_110 = arith.constant 2 : i32
    %112 = arith.addi %111, %c2_i32_110 : i32
    %113 = arith.index_cast %112 : i32 to index
    %c0_111 = arith.constant 0 : index
    %c0_112 = arith.constant 0 : index
    %114 = vector.load %arg4[%113, %c0_111, %c0_112] : memref<27x4x8xbf16, #tpu.memory_space<vmem>>, vector<1x4x8xbf16>
    %115 = vector.shape_cast %114 : vector<1x4x8xbf16> to vector<4x8xbf16>
    %c0_113 = arith.constant 0 : index
    %c0_114 = arith.constant 0 : index
    %116 = vector.load %arg7[%c0_113, %c0_114] : memref<64x8xf32, #tpu.memory_space<vmem>>, vector<64x8xf32>
    %cst_115 = arith.constant dense<0.000000e+00> : vector<64x8xf32>
    %117 = tpu.matmul %109, %115, %cst_115 {dimension_numbers = #tpu.dot_dimension_numbers<[1], [0], [0], [1], [0, 0, 1, 1], [], []>} : vector<64x4xbf16>, vector<4x8xbf16>, vector<64x8xf32> -> vector<64x8xf32>
    %118 = arith.addf %116, %117 : vector<64x8xf32>
    %c0_116 = arith.constant 0 : index
    %c0_117 = arith.constant 0 : index
    %119 = vector.load %arg7[%c0_116, %c0_117] : memref<64x8xf32, #tpu.memory_space<vmem>>, vector<64x8xf32>
    tpu.vector_store %arg7[%c0_116, %c0_117], %118 {strides = array<i32>} : memref<64x8xf32, #tpu.memory_space<vmem>>, vector<64x8xf32>,
    %c2_i32_118 = arith.constant 2 : i32
    %120 = arith.cmpi eq, %arg2, %c2_i32_118 : i32
    %121 = arith.extui %120 : i1 to i32
    %c0_i32_119 = arith.constant 0 : i32
    %122 = arith.cmpi ne, %121, %c0_i32_119 : i32
    scf.if %122 {
      %c0_120 = arith.constant 0 : index
      %c0_121 = arith.constant 0 : index
      %123 = vector.load %arg7[%c0_120, %c0_121] : memref<64x8xf32, #tpu.memory_space<vmem>>, vector<64x8xf32>
      %cst_122 = arith.constant dense<0.000000e+00> : vector<8xf32>
      %124 = vector.multi_reduction <add>, %123, %cst_122 [0] : vector<64x8xf32> to vector<8xf32>
      %125 = vector.shape_cast %124 : vector<8xf32> to vector<1x8xf32>
      %cst_123 = arith.constant 1.562500e-02 : f32
      %126 = vector.broadcast %cst_123 : f32 to vector<1x8xf32>
      %127 = arith.mulf %125, %126 : vector<1x8xf32>
      %128 = vector.broadcast %127 : vector<1x8xf32> to vector<64x8xf32>
      %129 = arith.subf %123, %128 : vector<64x8xf32>
      %c0_124 = arith.constant 0 : index
      %c0_125 = arith.constant 0 : index
      %c0_126 = arith.constant 0 : index
      %130 = vector.load %arg6[%c0_124, %c0_125, %c0_126] : memref<1x2x8xf32, #tpu.memory_space<vmem>>, vector<1x1x8xf32>
      %131 = vector.shape_cast %130 : vector<1x1x8xf32> to vector<1x8xf32>
      %132 = vector.shape_cast %125 : vector<1x8xf32> to vector<1x1x8xf32>
      tpu.vector_store %arg6[%c0_124, %c0_125, %c0_126], %132 {strides = array<i32>} : memref<1x2x8xf32, #tpu.memory_space<vmem>>, vector<1x1x8xf32>,
      %133 = arith.mulf %129, %129 : vector<64x8xf32>
      %cst_127 = arith.constant dense<0.000000e+00> : vector<8xf32>
      %134 = vector.multi_reduction <add>, %133, %cst_127 [0] : vector<64x8xf32> to vector<8xf32>
      %135 = vector.shape_cast %134 : vector<8xf32> to vector<1x8xf32>
      %c0_128 = arith.constant 0 : index
      %c1_129 = arith.constant 1 : index
      %c0_130 = arith.constant 0 : index
      %136 = vector.load %arg6[%c0_128, %c1_129, %c0_130] : memref<1x2x8xf32, #tpu.memory_space<vmem>>, vector<1x1x8xf32>
      %137 = vector.shape_cast %136 : vector<1x1x8xf32> to vector<1x8xf32>
      %138 = vector.shape_cast %135 : vector<1x8xf32> to vector<1x1x8xf32>
      tpu.vector_store %arg6[%c0_128, %c1_129, %c0_130], %138 {strides = array<i32>} : memref<1x2x8xf32, #tpu.memory_space<vmem>>, vector<1x1x8xf32>,
      %139 = arith.truncf %123 : vector<64x8xf32> to vector<64x8xbf16>
      %c0_131 = arith.constant 0 : index
      %c0_132 = arith.constant 0 : index
      %c0_133 = arith.constant 0 : index
      %140 = vector.load %arg5[%c0_131, %c0_132, %c0_133] : memref<1x64x8xbf16, #tpu.memory_space<vmem>>, vector<1x64x8xbf16>
      %141 = vector.shape_cast %140 : vector<1x64x8xbf16> to vector<64x8xbf16>
      %142 = vector.shape_cast %139 : vector<64x8xbf16> to vector<1x64x8xbf16>
      tpu.vector_store %arg5[%c0_131, %c0_132, %c0_133], %142 {strides = array<i32>} : memref<1x64x8xbf16, #tpu.memory_space<vmem>>, vector<1x64x8xbf16>,
    } else {
    }
    return
  }
  func.func @transform_0(%arg0: i32, %arg1: i32, %arg2: i32) -> (i32, i32, i32, i32) {
    %c6_i32 = arith.constant 6 : i32
    %0 = arith.muli %arg0, %c6_i32 : i32
    %1 = arith.addi %0, %arg1 : i32
    %2 = arith.addi %1, %arg2 : i32
    %c0_i32 = arith.constant 0 : i32
    %c0_i32_0 = arith.constant 0 : i32
    %c0_i32_1 = arith.constant 0 : i32
    %c0_i32_2 = arith.constant 0 : i32
    return %2, %c0_i32, %c0_i32_0, %c0_i32_1 : i32, i32, i32, i32
  }
  func.func @transform_1(%arg0: i32, %arg1: i32, %arg2: i32) -> (i32, i32, i32) {
    %c0_i32 = arith.constant 0 : i32
    %c0_i32_0 = arith.constant 0 : i32
    %c0_i32_1 = arith.constant 0 : i32
    %c0_i32_2 = arith.constant 0 : i32
    return %c0_i32, %c0_i32_0, %c0_i32_1 : i32, i32, i32
  }
  func.func @transform_2(%arg0: i32, %arg1: i32, %arg2: i32) -> (i32, i32, i32) {
    %c4_i32 = arith.constant 4 : i32
    %0 = arith.muli %arg0, %c4_i32 : i32
    %1 = arith.addi %0, %arg1 : i32
    %c0_i32 = arith.constant 0 : i32
    %c0_i32_0 = arith.constant 0 : i32
    %c0_i32_1 = arith.constant 0 : i32
    return %1, %c0_i32, %c0_i32_0 : i32, i32, i32
  }
  func.func @transform_3(%arg0: i32, %arg1: i32, %arg2: i32) -> (i32, i32, i32) {
    %c4_i32 = arith.constant 4 : i32
    %0 = arith.muli %arg0, %c4_i32 : i32
    %1 = arith.addi %0, %arg1 : i32
    %c0_i32 = arith.constant 0 : i32
    %c0_i32_0 = arith.constant 0 : i32
    %c0_i32_1 = arith.constant 0 : i32
    return %1, %c0_i32, %c0_i32_0 : i32, i32, i32
  }
}

module attributes {stable_mosaic.version = 11 : i64} {
  func.func @_scale_shift_act_kernel(%arg0: i32, %arg1: memref<8x512xbf16, #tpu.memory_space<vmem>>, %arg2: memref<1x512xf32, #tpu.memory_space<vmem>>, %arg3: memref<1x512xf32, #tpu.memory_space<vmem>>, %arg4: memref<8x512xf32, #tpu.memory_space<vmem>>) attributes {dimension_semantics = [#tpu.dimension_semantics<parallel>], iteration_bounds = array<i64: 1>, scalar_prefetch = 0 : i64, scratch_operands = 0 : i64, tpu.core_type = #tpu.core_type<tc>, window_params = [{transform_indices = @transform_0, window_bounds = array<i64: 8, 512>}, {pipeline_mode = #tpu.pipeline_mode<synchronous>, transform_indices = @transform_1, window_bounds = array<i64: 1, 512>}, {pipeline_mode = #tpu.pipeline_mode<synchronous>, transform_indices = @transform_2, window_bounds = array<i64: 1, 512>}, {transform_indices = @transform_3, window_bounds = array<i64: 8, 512>}]} {
    %c0 = arith.constant 0 : index
    %c0_0 = arith.constant 0 : index
    %0 = vector.load %arg1[%c0, %c0_0] : memref<8x512xbf16, #tpu.memory_space<vmem>>, vector<8x512xbf16>
    %1 = arith.extf %0 : vector<8x512xbf16> to vector<8x512xf32>
    %c0_1 = arith.constant 0 : index
    %c0_2 = arith.constant 0 : index
    %2 = vector.load %arg2[%c0_1, %c0_2] : memref<1x512xf32, #tpu.memory_space<vmem>>, vector<1x512xf32>
    %3 = vector.broadcast %2 : vector<1x512xf32> to vector<8x512xf32>
    %4 = arith.mulf %1, %3 : vector<8x512xf32>
    %c0_3 = arith.constant 0 : index
    %c0_4 = arith.constant 0 : index
    %5 = vector.load %arg3[%c0_3, %c0_4] : memref<1x512xf32, #tpu.memory_space<vmem>>, vector<1x512xf32>
    %6 = vector.broadcast %5 : vector<1x512xf32> to vector<8x512xf32>
    %7 = arith.addf %4, %6 : vector<8x512xf32>
    %cst = arith.constant 0.000000e+00 : f32
    %8 = vector.broadcast %cst : f32 to vector<8x512xf32>
    %9 = arith.maximumf %7, %8 : vector<8x512xf32>
    %c0_5 = arith.constant 0 : index
    %c0_6 = arith.constant 0 : index
    %10 = vector.load %arg4[%c0_5, %c0_6] : memref<8x512xf32, #tpu.memory_space<vmem>>, vector<8x512xf32>
    tpu.vector_store %arg4[%c0_5, %c0_6], %9 {strides = array<i32>} : memref<8x512xf32, #tpu.memory_space<vmem>>, vector<8x512xf32>,
    return
  }
  func.func @transform_0(%arg0: i32) -> (i32, i32) {
    %c0_i32 = arith.constant 0 : i32
    %c0_i32_0 = arith.constant 0 : i32
    return %arg0, %c0_i32 : i32, i32
  }
  func.func @transform_1(%arg0: i32) -> (i32, i32) {
    %c0_i32 = arith.constant 0 : i32
    %c0_i32_0 = arith.constant 0 : i32
    %c0_i32_1 = arith.constant 0 : i32
    return %c0_i32, %c0_i32_0 : i32, i32
  }
  func.func @transform_2(%arg0: i32) -> (i32, i32) {
    %c0_i32 = arith.constant 0 : i32
    %c0_i32_0 = arith.constant 0 : i32
    %c0_i32_1 = arith.constant 0 : i32
    return %c0_i32, %c0_i32_0 : i32, i32
  }
  func.func @transform_3(%arg0: i32) -> (i32, i32) {
    %c0_i32 = arith.constant 0 : i32
    %c0_i32_0 = arith.constant 0 : i32
    return %arg0, %c0_i32 : i32, i32
  }
}

</mosaic_0001>

<llo_original>
// kernel: tile.18
$region0: #{tile.18}
  #allocation0 [shape = 's32[1]{0}', space=sflag, size = 0x4, scoped, tag = 'scoped memory for tile.18']
  %s0 = inlined_call_operand.vmem [shape: f32[8], index: 0, kind: input, shape index: {}]
  %s1 = inlined_call_operand.vmem [shape: f32[64,8], index: 1, kind: output, shape index: {}]
  // Predicated region
  $region2: #{tile.18} parent=0 // pred_check
    _
  $region3: #{tile.18} parent=0 // pred_check_branch
    %3 = sbr.rel (0) target = $region5
  $region4: #{tile.18} parent=0 // pred_region
    _
  $region5: #{tile.18} parent=0 // pred_fallthru
    _
  %v4 = vld [vmem:[%s0] ss:$0 sm:$0xff]
  %5 = vst [vmem:[%s1] sm:$0xff] %v4
  %s6 = scalar_lea.vmem %s1, 8
  %7 = vst [vmem:[%s6] sm:$0xff] %v4
  %s8 = scalar_lea.vmem %s1, 16
  %9 = vst [vmem:[%s8] sm:$0xff] %v4
  %s10 = scalar_lea.vmem %s1, 24
  %11 = vst [vmem:[%s10] sm:$0xff] %v4
  %s12 = scalar_lea.vmem %s1, 32
  %13 = vst [vmem:[%s12] sm:$0xff] %v4
  %s14 = scalar_lea.vmem %s1, 40
  %15 = vst [vmem:[%s14] sm:$0xff] %v4
  %s16 = scalar_lea.vmem %s1, 48
  %17 = vst [vmem:[%s16] sm:$0xff] %v4
  %s18 = scalar_lea.vmem %s1, 56
  %19 = vst [vmem:[%s18] sm:$0xff] %v4

// kernel: tile.19
$region0: #{tile.19}
  %s0 = inlined_call_operand.vmem [shape: f32[64,8], index: 0, kind: input, shape index: {}]
  %s1 = inlined_call_operand.vmem [shape: f32[1,512], index: 1, kind: output, shape index: {}]
  $region1: #{tile.19} parent=0
    #allocation0 [shape = 'u8[16384]{0}', space=vmem, size = 0x4000, scoped, tag = 'scoped mem for output reshape']
    %s2 = smov 3
    %v3 = vld [vmem:[%s0] ss:$16 sm:%s2]
    %s4 = smov 12
    %v5 = vld [vmem:[%s0] ss:$16 sm:%s4]
    %vm6 = vcmask 1043458
    %v7 = vsel %vm6, %v5, %v3
    %vm8 = vcmask 64512
    %9 = vst.msk [vmem:[#allocation0] ss:$8 sm:$0xf] %vm8, %v7
    %s10 = scalar_lea.vmem %s0, 15
    %s11 = smov 3
    %v12 = vld [vmem:[%s10] ss:$16 sm:%s11]
    %s13 = scalar_lea.vmem %s0, 15
    %s14 = smov 12
    %v15 = vld [vmem:[%s13] ss:$16 sm:%s14]
    %vm16 = vcmask 1043458
    %v17 = vsel %vm16, %v15, %v12
    %18 = vrot.lane.b32.xlu0 %v17, 120
    %v19 = vpop.permute.xlu0 %18
    %vm20 = vcmask 1048512
    %21 = vst.msk [vmem:[#allocation0] ss:$8 sm:$0xf] %vm20, %v19
    %s22 = scalar_lea.vmem %s0, 14
    %s23 = smov 3
    %v24 = vld [vmem:[%s22] ss:$16 sm:%s23]
    %s25 = scalar_lea.vmem %s0, 14
    %s26 = smov 12
    %v27 = vld [vmem:[%s25] ss:$16 sm:%s26]
    %vm28 = vcmask 1043458
    %v29 = vsel %vm28, %v27, %v24
    %30 = vrot.lane.b32.xlu0 %v29, 112
    %v31 = vpop.permute.xlu0 %30
    %vm32 = vcmask 982912
    %33 = vst.msk [vmem:[#allocation0] ss:$8 sm:$0xf] %vm32, %v31
    %s34 = scalar_lea.vmem %s0, 13
    %s35 = smov 3
    %v36 = vld [vmem:[%s34] ss:$16 sm:%s35]
    %s37 = scalar_lea.vmem %s0, 13
    %s38 = smov 12
    %v39 = vld [vmem:[%s37] ss:$16 sm:%s38]
    %vm40 = vcmask 1043458
    %v41 = vsel %vm40, %v39, %v36
    %42 = vrot.lane.b32.xlu0 %v41, 104
    %v43 = vpop.permute.xlu0 %42
    %vm44 = vcmask 917312
    %45 = vst.msk [vmem:[#allocation0] ss:$8 sm:$0xf] %vm44, %v43
    %s46 = scalar_lea.vmem %s0, 12
    %s47 = smov 3
    %v48 = vld [vmem:[%s46] ss:$16 sm:%s47]
    %s49 = scalar_lea.vmem %s0, 12
    %s50 = smov 12
    %v51 = vld [vmem:[%s49] ss:$16 sm:%s50]
    %vm52 = vcmask 1043458
    %v53 = vsel %vm52, %v51, %v48
    %54 = vrot.lane.b32.xlu0 %v53, 96
    %v55 = vpop.permute.xlu0 %54
    %vm56 = vcmask 851712
    %57 = vst.msk [vmem:[#allocation0] ss:$8 sm:$0xf] %vm56, %v55
    %s58 = scalar_lea.vmem %s0, 11
    %s59 = smov 3
    %v60 = vld [vmem:[%s58] ss:$16 sm:%s59]
    %s61 = scalar_lea.vmem %s0, 11
    %s62 = smov 12
    %v63 = vld [vmem:[%s61] ss:$16 sm:%s62]
    %vm64 = vcmask 1043458
    %v65 = vsel %vm64, %v63, %v60
    %66 = vrot.lane.b32.xlu0 %v65, 88
    %v67 = vpop.permute.xlu0 %66
    %vm68 = vcmask 786112
    %69 = vst.msk [vmem:[#allocation0] ss:$8 sm:$0xf] %vm68, %v67
    %s70 = scalar_lea.vmem %s0, 10
    %s71 = smov 3
    %v72 = vld [vmem:[%s70] ss:$16 sm:%s71]
    %s73 = scalar_lea.vmem %s0, 10
    %s74 = smov 12
    %v75 = vld [vmem:[%s73] ss:$16 sm:%s74]
    %vm76 = vcmask 1043458
    %v77 = vsel %vm76, %v75, %v72
    %78 = vrot.lane.b32.xlu0 %v77, 80
    %v79 = vpop.permute.xlu0 %78
    %vm80 = vcmask 720512
    %81 = vst.msk [vmem:[#allocation0] ss:$8 sm:$0xf] %vm80, %v79
    %s82 = scalar_lea.vmem %s0, 9
    %s83 = smov 3
    %v84 = vld [vmem:[%s82] ss:$16 sm:%s83]
    %s85 = scalar_lea.vmem %s0, 9
    %s86 = smov 12
    %v87 = vld [vmem:[%s85] ss:$16 sm:%s86]
    %vm88 = vcmask 1043458
    %v89 = vsel %vm88, %v87, %v84
    %90 = vrot.lane.b32.xlu0 %v89, 72
    %v91 = vpop.permute.xlu0 %90
    %vm92 = vcmask 654912
    %93 = vst.msk [vmem:[#allocation0] ss:$8 sm:$0xf] %vm92, %v91
    %s94 = scalar_lea.vmem %s0, 8
    %s95 = smov 3
    %v96 = vld [vmem:[%s94] ss:$16 sm:%s95]
    %s97 = scalar_lea.vmem %s0, 8
    %s98 = smov 12
    %v99 = vld [vmem:[%s97] ss:$16 sm:%s98]
    %vm100 = vcmask 1043458
    %v101 = vsel %vm100, %v99, %v96
    %102 = vrot.lane.b32.xlu0 %v101, 64
    %v103 = vpop.permute.xlu0 %102
    %vm104 = vcmask 589312
    %105 = vst.msk [vmem:[#allocation0] ss:$8 sm:$0xf] %vm104, %v103
    %s106 = scalar_lea.vmem %s0, 7
    %s107 = smov 3
    %v108 = vld [vmem:[%s106] ss:$16 sm:%s107]
    %s109 = scalar_lea.vmem %s0, 7
    %s110 = smov 12
    %v111 = vld [vmem:[%s109] ss:$16 sm:%s110]
    %vm112 = vcmask 1043458
    %v113 = vsel %vm112, %v111, %v108
    %114 = vrot.lane.b32.xlu0 %v113, 56
    %v115 = vpop.permute.xlu0 %114
    %vm116 = vcmask 523712
    %117 = vst.msk [vmem:[#allocation0] ss:$8 sm:$0xf] %vm116, %v115
    %s118 = scalar_lea.vmem %s0, 6
    %s119 = smov 3
    %v120 = vld [vmem:[%s118] ss:$16 sm:%s119]
    %s121 = scalar_lea.vmem %s0, 6
    %s122 = smov 12
    %v123 = vld [vmem:[%s121] ss:$16 sm:%s122]
    %vm124 = vcmask 1043458
    %v125 = vsel %vm124, %v123, %v120
    %126 = vrot.lane.b32.xlu0 %v125, 48
    %v127 = vpop.permute.xlu0 %126
    %vm128 = vcmask 458112
    %129 = vst.msk [vmem:[#allocation0] ss:$8 sm:$0xf] %vm128, %v127
    %s130 = scalar_lea.vmem %s0, 5
    %s131 = smov 3
    %v132 = vld [vmem:[%s130] ss:$16 sm:%s131]
    %s133 = scalar_lea.vmem %s0, 5
    %s134 = smov 12
    %v135 = vld [vmem:[%s133] ss:$16 sm:%s134]
    %vm136 = vcmask 1043458
    %v137 = vsel %vm136, %v135, %v132
    %138 = vrot.lane.b32.xlu0 %v137, 40
    %v139 = vpop.permute.xlu0 %138
    %vm140 = vcmask 392512
    %141 = vst.msk [vmem:[#allocation0] ss:$8 sm:$0xf] %vm140, %v139
    %s142 = scalar_lea.vmem %s0, 4
    %s143 = smov 3
    %v144 = vld [vmem:[%s142] ss:$16 sm:%s143]
    %s145 = scalar_lea.vmem %s0, 4
    %s146 = smov 12
    %v147 = vld [vmem:[%s145] ss:$16 sm:%s146]
    %vm148 = vcmask 1043458
    %v149 = vsel %vm148, %v147, %v144
    %150 = vrot.lane.b32.xlu0 %v149, 32
    %v151 = vpop.permute.xlu0 %150
    %vm152 = vcmask 326912
    %153 = vst.msk [vmem:[#allocation0] ss:$8 sm:$0xf] %vm152, %v151
    %s154 = scalar_lea.vmem %s0, 3
    %s155 = smov 3
    %v156 = vld [vmem:[%s154] ss:$16 sm:%s155]
    %s157 = scalar_lea.vmem %s0, 3
    %s158 = smov 12
    %v159 = vld [vmem:[%s157] ss:$16 sm:%s158]
    %vm160 = vcmask 1043458
    %v161 = vsel %vm160, %v159, %v156
    %162 = vrot.lane.b32.xlu0 %v161, 24
    %v163 = vpop.permute.xlu0 %162
    %vm164 = vcmask 261312
    %165 = vst.msk [vmem:[#allocation0] ss:$8 sm:$0xf] %vm164, %v163
    %s166 = scalar_lea.vmem %s0, 2
    %s167 = smov 3
    %v168 = vld [vmem:[%s166] ss:$16 sm:%s167]
    %s169 = scalar_lea.vmem %s0, 2
    %s170 = smov 12
    %v171 = vld [vmem:[%s169] ss:$16 sm:%s170]
    %vm172 = vcmask 1043458
    %v173 = vsel %vm172, %v171, %v168
    %174 = vrot.lane.b32.xlu0 %v173, 16
    %v175 = vpop.permute.xlu0 %174
    %vm176 = vcmask 195712
    %177 = vst.msk [vmem:[#allocation0] ss:$8 sm:$0xf] %vm176, %v175
    %s178 = scalar_lea.vmem %s0, 1
    %s179 = smov 3
    %v180 = vld [vmem:[%s178] ss:$16 sm:%s179]
    %s181 = scalar_lea.vmem %s0, 1
    %s182 = smov 12
    %v183 = vld [vmem:[%s181] ss:$16 sm:%s182]
    %vm184 = vcmask 1043458
    %v185 = vsel %vm184, %v183, %v180
    %186 = vrot.lane.b32.xlu0 %v185, 8
    %v187 = vpop.permute.xlu0 %186
    %vm188 = vcmask 130112
    %189 = vst.msk [vmem:[#allocation0] ss:$8 sm:$0xf] %vm188, %v187
    %s191 = sshll.u32 1, 1
    %s192 = ssub.s32 %s191, 1
    %v194 = vld [vmem:[#allocation0] sm:%s192]
    %s195 = sshll.u32 1, 1
    %s196 = ssub.s32 %s195, 1
    %197 = vst [vmem:[%s1] sm:%s196] %v194
    %s198 = scalar_lea.vmem [#allocation0], 8
    %v199 = vld [vmem:[%s198] sm:%s192]
    %s200 = sshll.u32 1, 1
    %s201 = ssub.s32 %s200, 1
    %s202 = scalar_lea.vmem %s1, 1
    %203 = vst [vmem:[%s202] sm:%s201] %v199
    %s204 = scalar_lea.vmem [#allocation0], 16
    %v205 = vld [vmem:[%s204] sm:%s192]
    %s206 = sshll.u32 1, 1
    %s207 = ssub.s32 %s206, 1
    %s208 = smul.addr 1, 2
    %s209 = scalar_lea.vmem %s1, %s208
    %210 = vst [vmem:[%s209] sm:%s207] %v205
    %s211 = scalar_lea.vmem [#allocation0], 24
    %v212 = vld [vmem:[%s211] sm:%s192]
    %s213 = sshll.u32 1, 1
    %s214 = ssub.s32 %s213, 1
    %s215 = smul.addr 1, 3
    %s216 = scalar_lea.vmem %s1, %s215
    %217 = vst [vmem:[%s216] sm:%s214] %v212

// kernel: unit3d_forward.3
$region0: #{unit3d_forward.3}
  #allocation0 [shape = 'u32[]', space=smem, size = 0x4, offset = 0x4, fixed_abs, tag = 'smem constant byte address 0x4 - core index']
  #allocation1 [shape = 'u32[144,128]{1,0:T(1,128)}', space=vmem, size = 0x12000, scoped, tag = 'internal scratch']
  %s0 = inlined_call_operand.vmem [shape: bf16[8,512], index: 0, kind: input, shape index: {}]
  %s1 = inlined_call_operand.vmem [shape: f32[1,512], index: 1, kind: input, shape index: {}]
  %s2 = inlined_call_operand.vmem [shape: f32[1,512], index: 2, kind: input, shape index: {}]
  %s3 = inlined_call_operand.vmem [shape: f32[8,512], index: 3, kind: output, shape index: {}]
  %s4 = sld [smem:[#allocation0]]
  $region22: #{unit3d_forward.3} parent=0
    _
  %s6 = ssub.s32 1, %s4
  %s7 = scalar_select 0, %s6, %s4
  // Predicated region
  $region2: #{unit3d_forward.3} parent=0 // pred_check
    _
  $region3: #{unit3d_forward.3} parent=0 // pred_check_branch
    %9 = sbr.rel (0) target = $region5
  $region4: #{unit3d_forward.3} parent=0 // pred_region
    _
  $region5: #{unit3d_forward.3} parent=0 // pred_fallthru
    _
  // Predicated region
  $region6: #{unit3d_forward.3} parent=0 // pred_check
    _
  $region7: #{unit3d_forward.3} parent=0 // pred_check_branch
    %11 = sbr.rel (0) target = $region9
  $region8: #{unit3d_forward.3} parent=0 // pred_region
    _
  $region9: #{unit3d_forward.3} parent=0 // pred_fallthru
    _
  // Predicated region
  $region10: #{unit3d_forward.3} parent=0 // pred_check
    _
  $region11: #{unit3d_forward.3} parent=0 // pred_check_branch
    %13 = sbr.rel (0) target = $region13
  $region12: #{unit3d_forward.3} parent=0 // pred_region
    _
  $region13: #{unit3d_forward.3} parent=0 // pred_fallthru
    _
  %v14 = vld [vmem:[%s0] sm:$0xff]
  %v15 = vld [vmem:[%s0 + $0x8] sm:$0xff]
  %v16 = vunpack.c.l.bf16 %v14
  %v17 = vunpack.c.h.bf16 %v14
  %v18 = vunpack.c.l.bf16 %v15
  %v19 = vunpack.c.h.bf16 %v15
  %v20 = vld [vmem:[%s1] sm:$0xf]
  %v22 = vlaneseq
  %v23 = vshrl.u32 %v22, 7
  %v24 = vsub.s32 0, %v23
  %v25 = vrot.slane %v20, %v24
  %v26 = vlaneseq
  %v27 = vshrl.u32 %v26, 7
  %v28 = vsub.s32 1, %v27
  %v29 = vrot.slane %v20, %v28
  %v30 = vlaneseq
  %v31 = vshrl.u32 %v30, 7
  %v32 = vsub.s32 2, %v31
  %v33 = vrot.slane %v20, %v32
  %v34 = vlaneseq
  %v35 = vshrl.u32 %v34, 7
  %v36 = vsub.s32 3, %v35
  %v37 = vrot.slane %v20, %v36
  %v42 = vmul.f32 %v16, %v25
  %v43 = vmul.f32 %v17, %v29
  %v44 = vmul.f32 %v18, %v33
  %v45 = vmul.f32 %v19, %v37
  %v46 = vld [vmem:[%s2] sm:$0xf]
  %v48 = vlaneseq
  %v49 = vshrl.u32 %v48, 7
  %v50 = vsub.s32 0, %v49
  %v51 = vrot.slane %v46, %v50
  %v52 = vlaneseq
  %v53 = vshrl.u32 %v52, 7
  %v54 = vsub.s32 1, %v53
  %v55 = vrot.slane %v46, %v54
  %v56 = vlaneseq
  %v57 = vshrl.u32 %v56, 7
  %v58 = vsub.s32 2, %v57
  %v59 = vrot.slane %v46, %v58
  %v60 = vlaneseq
  %v61 = vshrl.u32 %v60, 7
  %v62 = vsub.s32 3, %v61
  %v63 = vrot.slane %v46, %v62
  %v68 = vadd.f32 %v42, %v51
  %v69 = vadd.f32 %v43, %v55
  %v70 = vadd.f32 %v44, %v59
  %v71 = vadd.f32 %v45, %v63
  %v72 = vmax.f32 %v68, 0.0
  %v73 = vmax.f32 %v69, 0.0
  %v74 = vmax.f32 %v70, 0.0
  %v75 = vmax.f32 %v71, 0.0
  %76 = vst [vmem:[%s3] sm:$0xff] %v72
  %77 = vst [vmem:[%s3 + $0x8] sm:$0xff] %v73
  %78 = vst [vmem:[%s3 + $0x10] sm:$0xff] %v74
  %79 = vst [vmem:[%s3 + $0x18] sm:$0xff] %v75
  // Predicated region
  $region14: #{unit3d_forward.3} parent=0 // pred_check
    _
  $region15: #{unit3d_forward.3} parent=0 // pred_check_branch
    %81 = sbr.rel (0) target = $region17
  $region16: #{unit3d_forward.3} parent=0 // pred_region
    _
  $region17: #{unit3d_forward.3} parent=0 // pred_fallthru
    _
  // Predicated region
  $region18: #{unit3d_forward.3} parent=0 // pred_check
    _
  $region19: #{unit3d_forward.3} parent=0 // pred_check_branch
    %83 = sbr.rel (0) target = $region21
  $region20: #{unit3d_forward.3} parent=0 // pred_region
    _
  $region21: #{unit3d_forward.3} parent=0 // pred_fallthru
    _

// kernel: unit3d_forward.2
$region0: #{unit3d_forward.2}
  #allocation0 [shape = 'u32[]', space=smem, size = 0x4, offset = 0x4, fixed_abs, tag = 'smem constant byte address 0x4 - core index']
  #allocation1 [shape = 'u32[144,128]{1,0:T(1,128)}', space=vmem, size = 0x12000, scoped, tag = 'internal scratch']
  #allocation2 [shape = 'f32[64,8]{1,0:T(8,128)}', space=vmem, size = 0x8000, scoped, tag = 'scratch operand']
  %s0 = inlined_call_operand.vmem [shape: bf16[12,10,10,4], index: 0, kind: input, shape index: {}]
  %s1 = inlined_call_operand.vmem [shape: bf16[27,4,8], index: 1, kind: input, shape index: {}]
  %s2 = inlined_call_operand.vmem [shape: bf16[8,64,8], index: 2, kind: output, shape index: {0}]
  %s3 = inlined_call_operand.vmem [shape: f32[8,2,8], index: 3, kind: output, shape index: {1}]
  %4 = xla_tuple %s2, %s3
  %s5 = sld [smem:[#allocation0]]
  $region57: #{unit3d_forward.2} parent=0
    _
  %s7 = ssub.s32 1, %s5
  %s8 = scalar_select 0, %s7, %s5
  loop: start=0, step=1, limit=26
  $region2: #{unit3d_forward.2} parent=0 // loop_pre_header
    _
  $region3: #{unit3d_forward.2} parent=0 // loop_header
    %s10 = sphi 0, %s14
    %p11 = scmp.ge.s32.totalorder %s10, 26
    %s17 = sphi 0, %s36
    %s18 = sphi 0, %s32
    %s19 = sphi 0, %s28
    %s20 = sphi 0, %s17
    %s21 = sphi 0, %s18
    %s22 = sphi 0, %s19
    %s23 = sphi 0, %s20
    %s24 = sphi 0, %s21
    %s25 = sphi 0, %s22
    %s45 = sphi 0, %s47
    %s48 = sphi 0, %s45
    %s49 = sphi 0, %s48
    %s65 = sphi 0, %s49
    %s69 = sphi 0, %s69
    %s71 = sphi 0, %s69
    %s72 = sphi 0, %s71
    %s86 = sphi 0, %s72
    %s96 = sphi 0, %s98
    %s99 = sphi 0, %s96
    %s100 = sphi 0, %s99
    %s116 = sphi 0, %s100
    %s126 = sphi 0, %s128
    %s129 = sphi 0, %s126
    %s130 = sphi 0, %s129
    %s146 = sphi 0, %s130
  $region4: #{unit3d_forward.2} parent=0 // loop_header_branch
    %13 = sbr.rel (%p11) target = $region8
  $region5: #{unit3d_forward.2} parent=0 // loop_body
    %s15 = ssub.s32 %s10, 1
    %s16 = ssub.s32 %s10, 2
    %s26 = sadd.s32 1, %s19
    %p27 = scmp.ge.s32.totalorder %s26, 3
    %s28 = scalar_select %p27, 0, %s26
    %s29 = sadd.s32 1, %s18
    %s30 = scalar_select %p27, %s29, %s18
    %p31 = scmp.ge.s32.totalorder %s30, 4
    %s32 = scalar_select %p31, 0, %s30
    %s33 = sadd.s32 1, %s17
    %s34 = scalar_select %p31, %s33, %s17
    %p35 = scmp.ge.s32.totalorder %s34, 2
    %s36 = scalar_select %p35, 0, %s34
    %s37 = smul.u32 %s17, 6
    %s38 = sadd.s32 %s37, %s18
    %s39 = sadd.s32 %s38, %s19
    %s40 = smul.u32 %s36, 6
    %s41 = sadd.s32 %s40, %s32
    %s42 = sadd.s32 %s41, %s28
    %s43 = ssub.s32 %s39, %s42
    %p44 = scmp.eq.s32.totalorder %s43, 0
    %s46 = sadd.s32 %s45, 1
    %s47 = scalar_select %p44, %s45, %s46
    %p50 = pneg %p44
    %p51 = scmp.eq.s32.totalorder %s10, 23
    %p52 = por %p50, %p51
    %p53 = scmp.ne.s32.totalorder %s45, %s48
    %p54 = scmp.eq.s32.totalorder %s10, 0
    %p55 = por %p53, %p54
    %p56 = scmp.ne.s32.totalorder %s45, %s48
    %p57 = scmp.eq.s32.totalorder %s15, 23
    %p58 = por %p56, %p57
    %p59 = scmp.ne.s32.totalorder %s48, %s49
    %p60 = scmp.eq.s32.totalorder %s15, 0
    %p61 = por %p59, %p60
    %p62 = scmp.ne.s32.totalorder %s48, %s49
    %p63 = scmp.eq.s32.totalorder %s16, 23
    %p64 = por %p62, %p63
    %p66 = scmp.ne.s32.totalorder %s49, %s65
    %p67 = scmp.eq.s32.totalorder %s16, 0
    %p68 = por %p66, %p67
    %s70 = sadd.s32 %s69, 1
    %p73 = scmp.eq.s32.totalorder %s10, 23
    %p74 = scmp.ne.s32.totalorder %s69, %s71
    %p75 = scmp.eq.s32.totalorder %s10, 0
    %p76 = por %p74, %p75
    %p77 = scmp.ne.s32.totalorder %s69, %s71
    %p78 = scmp.eq.s32.totalorder %s15, 23
    %p79 = por %p77, %p78
    %p80 = scmp.ne.s32.totalorder %s71, %s72
    %p81 = scmp.eq.s32.totalorder %s15, 0
    %p82 = por %p80, %p81
    %p83 = scmp.ne.s32.totalorder %s71, %s72
    %p84 = scmp.eq.s32.totalorder %s16, 23
    %p85 = por %p83, %p84
    %p87 = scmp.ne.s32.totalorder %s72, %s86
    %p88 = scmp.eq.s32.totalorder %s16, 0
    %p89 = por %p87, %p88
    %s90 = smul.u32 %s17, 4
    %s91 = sadd.s32 %s90, %s18
    %s92 = smul.u32 %s36, 4
    %s93 = sadd.s32 %s92, %s32
    %s94 = ssub.s32 %s91, %s93
    %p95 = scmp.eq.s32.totalorder %s94, 0
    %s97 = sadd.s32 %s96, 1
    %s98 = scalar_select %p95, %s96, %s97
    %p101 = pneg %p95
    %p102 = scmp.eq.s32.totalorder %s10, 23
    %p103 = por %p101, %p102
    %p104 = scmp.ne.s32.totalorder %s96, %s99
    %p105 = scmp.eq.s32.totalorder %s10, 0
    %p106 = por %p104, %p105
    %p107 = scmp.ne.s32.totalorder %s96, %s99
    %p108 = scmp.eq.s32.totalorder %s15, 23
    %p109 = por %p107, %p108
    %p110 = scmp.ne.s32.totalorder %s99, %s100
    %p111 = scmp.eq.s32.totalorder %s15, 0
    %p112 = por %p110, %p111
    %p113 = scmp.ne.s32.totalorder %s99, %s100
    %p114 = scmp.eq.s32.totalorder %s16, 23
    %p115 = por %p113, %p114
    %p117 = scmp.ne.s32.totalorder %s100, %s116
    %p118 = scmp.eq.s32.totalorder %s16, 0
    %p119 = por %p117, %p118
    %s120 = smul.u32 %s17, 4
    %s121 = sadd.s32 %s120, %s18
    %s122 = smul.u32 %s36, 4
    %s123 = sadd.s32 %s122, %s32
    %s124 = ssub.s32 %s121, %s123
    %p125 = scmp.eq.s32.totalorder %s124, 0
    %s127 = sadd.s32 %s126, 1
    %s128 = scalar_select %p125, %s126, %s127
    %p131 = pneg %p125
    %p132 = scmp.eq.s32.totalorder %s10, 23
    %p133 = por %p131, %p132
    %p134 = scmp.ne.s32.totalorder %s126, %s129
    %p135 = scmp.eq.s32.totalorder %s10, 0
    %p136 = por %p134, %p135
    %p137 = scmp.ne.s32.totalorder %s126, %s129
    %p138 = scmp.eq.s32.totalorder %s15, 23
    %p139 = por %p137, %p138
    %p140 = scmp.ne.s32.totalorder %s129, %s130
    %p141 = scmp.eq.s32.totalorder %s15, 0
    %p142 = por %p140, %p141
    %p143 = scmp.ne.s32.totalorder %s129, %s130
    %p144 = scmp.eq.s32.totalorder %s16, 23
    %p145 = por %p143, %p144
    %p147 = scmp.ne.s32.totalorder %s130, %s146
    %p148 = scmp.eq.s32.totalorder %s16, 0
    %p149 = por %p147, %p148
    %p150 = scmp.le.s32.totalorder 1, %s10
    %p151 = scmp.lt.s32.totalorder %s10, 25
    %p152 = pnand %p150, %p151
    %p153 = pneg %p152
    // Predicated region
    $region9: #{unit3d_forward.2} parent=5 // pred_check
      _
    $region10: #{unit3d_forward.2} parent=5 // pred_check_branch
      %155 = sbr.rel (%p152) target = $region12
    $region11: #{unit3d_forward.2} parent=5 // pred_region
      %s156 = ssub.s32 %s10, 1
      // Predicated region
      $region13: #{unit3d_forward.2} parent=11 // pred_check
        %p157 = pneg %p82
      $region14: #{unit3d_forward.2} parent=11 // pred_check_branch
        %159 = sbr.rel (%p157) target = $region16
      $region15: #{unit3d_forward.2} parent=11 // pred_region
        _
      $region16: #{unit3d_forward.2} parent=11 // pred_fallthru
        _
    $region12: #{unit3d_forward.2} parent=5 // pred_fallthru
      _
    %p160 = scmp.lt.s32.totalorder %s10, 24
    // Predicated region
    $region17: #{unit3d_forward.2} parent=5 // pred_check
      %p161 = pneg %p160
    $region18: #{unit3d_forward.2} parent=5 // pred_check_branch
      %163 = sbr.rel (%p161) target = $region20
    $region19: #{unit3d_forward.2} parent=5 // pred_region
      // Predicated region
      $region21: #{unit3d_forward.2} parent=19 // pred_check
        %p164 = pneg %p55
      $region22: #{unit3d_forward.2} parent=19 // pred_check_branch
        %166 = sbr.rel (%p164) target = $region24
      $region23: #{unit3d_forward.2} parent=19 // pred_region
        %s167 = smul.u32 %s17, 6
        %s168 = sadd.s32 %s167, %s18
        %s169 = sadd.s32 %s168, %s19
        %p170 = scmp.lt.s32.totalorder %s169, 11
        %s171 = scalar_select %p170, %s169, 11
        %s172 = smul.addr %s171, 20
        %s173 = smul.addr %s172, 4
        %s174 = scalar_lea.vmem %s0, %s173
        %s175 = smul.u32 %s17, 6
        %s176 = sadd.s32 %s175, %s18
        %s177 = sadd.s32 %s176, %s19
      $region24: #{unit3d_forward.2} parent=19 // pred_fallthru
        _
    $region20: #{unit3d_forward.2} parent=5 // pred_fallthru
      _
    %p178 = scmp.le.s32.totalorder 1, %s10
    %p179 = scmp.lt.s32.totalorder %s10, 25
    %p180 = pnand %p178, %p179
    %p181 = pneg %p180
    // Predicated region
    $region25: #{unit3d_forward.2} parent=5 // pred_check
      _
    $region26: #{unit3d_forward.2} parent=5 // pred_check_branch
      %183 = sbr.rel (%p180) target = $region28
    $region27: #{unit3d_forward.2} parent=5 // pred_region
      %s184 = ssub.s32 %s10, 1
      %s185 = smul.u32 %s20, 6
      %s186 = sadd.s32 %s185, %s21
      %s187 = sadd.s32 %s186, %s22
      %p188 = scmp.lt.s32.totalorder %s187, 11
      %s189 = scalar_select %p188, %s187, 11
      %s190 = smul.addr %s189, 20
      %s191 = smul.addr %s190, 4
      %s192 = scalar_lea.vmem %s0, %s191
      %p193 = pneg %p61
      %p194 = pneg %p58
      %p195 = pneg %p82
      %p196 = pneg %p79
      %p197 = pneg %p112
      %p198 = pneg %p109
      %s199 = smul.u32 %s20, 4
      %s200 = sadd.s32 %s199, %s21
      %p201 = scmp.lt.s32.totalorder %s200, 7
      %s202 = scalar_select %p201, %s200, 7
      %s203 = smul.addr %s202, 8
      %s204 = smul.addr %s203, 4
      %s205 = scalar_lea.vmem %s2, %s204
      %p206 = pneg %p142
      %p207 = pneg %p139
      %s208 = smul.u32 %s20, 4
      %s209 = sadd.s32 %s208, %s21
      %p210 = scmp.lt.s32.totalorder %s209, 7
      %s211 = scalar_select %p210, %s209, 7
      %s212 = smul.addr %s211, 2
      %s213 = scalar_lea.vmem %s3, %s212
      %s214 = smul.u32 %s20, 6
      %s215 = sadd.s32 %s214, %s21
      %s216 = sadd.s32 %s215, %s22
      %p217 = scmp.lt.s32.totalorder %s216, 11
      %s218 = scalar_select %p217, %s216, 11
      %s219 = smul.addr %s218, 20
      %s220 = smul.addr %s219, 4
      %s221 = scalar_lea.vmem %s0, %s220
      %s222 = smul.u32 %s20, 6
      %s223 = sadd.s32 %s222, %s21
      %s224 = sadd.s32 %s223, %s22
      %s225 = smul.u32 %s20, 4
      %s226 = sadd.s32 %s225, %s21
      %p227 = scmp.lt.s32.totalorder %s226, 7
      %s228 = scalar_select %p227, %s226, 7
      %s229 = smul.addr %s228, 8
      %s230 = smul.addr %s229, 4
      %s231 = scalar_lea.vmem %s2, %s230
      %s232 = smul.u32 %s20, 4
      %s233 = sadd.s32 %s232, %s21
      %s234 = smul.u32 %s20, 4
      %s235 = sadd.s32 %s234, %s21
      %p236 = scmp.lt.s32.totalorder %s235, 7
      %s237 = scalar_select %p236, %s235, 7
      %s238 = smul.addr %s237, 2
      %s239 = scalar_lea.vmem %s3, %s238
      %s240 = smul.u32 %s20, 4
      %s241 = sadd.s32 %s240, %s21
      %p243 = scmp.eq.s32.totalorder %s22, 0
      // Predicated region
      $region29: #{unit3d_forward.2} parent=27 // pred_check
        %p244 = pneg %p243
      $region30: #{unit3d_forward.2} parent=27 // pred_check_branch
        %246 = sbr.rel (%p244) target = $region32
      $region31: #{unit3d_forward.2} parent=27 // pred_region
        %vm247 = vcmask 64512
        %248 = vst.msk [vmem:[#allocation2] sm:$0xff] %vm247, 0.0
        %249 = vst.msk [vmem:[#allocation2 + $0x8] sm:$0xff] %vm247, 0.0
        %250 = vst.msk [vmem:[#allocation2 + $0x10] sm:$0xff] %vm247, 0.0
        %251 = vst.msk [vmem:[#allocation2 + $0x18] sm:$0xff] %vm247, 0.0
        %252 = vst.msk [vmem:[#allocation2 + $0x20] sm:$0xff] %vm247, 0.0
        %253 = vst.msk [vmem:[#allocation2 + $0x28] sm:$0xff] %vm247, 0.0
        %254 = vst.msk [vmem:[#allocation2 + $0x30] sm:$0xff] %vm247, 0.0
        %255 = vst.msk [vmem:[#allocation2 + $0x38] sm:$0xff] %vm247, 0.0
      $region32: #{unit3d_forward.2} parent=27 // pred_fallthru
        _
      %v256 = vld [vmem:[%s221] sm:$0xf]
      %v257 = vld [vmem:[%s221 + $0x8] sm:$0xf]
      %v258 = vld [vmem:[%s221 + $0x10] sm:$0xf]
      %v259 = vld [vmem:[%s221 + $0x18] sm:$0xf]
      %v260 = vld [vmem:[%s221 + $0x20] sm:$0xf]
      %v261 = vld [vmem:[%s221 + $0x28] sm:$0xf]
      %v262 = vld [vmem:[%s221 + $0x30] sm:$0xf]
      %v263 = vld [vmem:[%s221 + $0x38] sm:$0xf]
      %s264 = smul.u32 %s22, 9
      %s265 = smul.addr %s264, 2
      %s266 = scalar_lea.vmem %s1, %s265
      %v267 = vld [vmem:[%s266] sm:$0x3]
      %v268 = vld [vmem:[#allocation2] sm:$0xff]
      %v269 = vld [vmem:[#allocation2 + $0x8] sm:$0xff]
      %v270 = vld [vmem:[#allocation2 + $0x10] sm:$0xff]
      %v271 = vld [vmem:[#allocation2 + $0x18] sm:$0xff]
      %v272 = vld [vmem:[#allocation2 + $0x20] sm:$0xff]
      %v273 = vld [vmem:[#allocation2 + $0x28] sm:$0xff]
      %v274 = vld [vmem:[#allocation2 + $0x30] sm:$0xff]
      %v275 = vld [vmem:[#allocation2 + $0x38] sm:$0xff]
      %v284 = vunpack.c.l.b16 %v256
      %v285 = vunpack.c.l.b16 %v257
      %v286 = vunpack.c.l.b16 %v258
      %v287 = vunpack.c.l.b16 %v259
      %v288 = vunpack.c.l.b16 %v260
      %v289 = vunpack.c.l.b16 %v261
      %v290 = vunpack.c.l.b16 %v262
      %v291 = vunpack.c.l.b16 %v263
      %v292 = vpack.c.b16 %v285, %v284
      %v293 = vpack.c.b16 %v287, %v286
      %v294 = vpack.c.b16 %v289, %v288
      %v295 = vpack.c.b16 %v291, %v290
      %vm296 = vcmask 31744
      %v298 = vsel %vm296, %v292, 0
      %v301 = vsel %vm296, %v293, 0
      %v304 = vsel %vm296, %v294, 0
      %v307 = vsel %vm296, %v295, 0
      %vm309 = vcmask 1041408
      %v311 = vsel %vm309, %v267, 0
      %313 = vmatprep.subr.bf16.mxu0 0
      %314 = vmatpush1.bf16.msra.mxu0 0
      %315 = vmatprep.subr.bf16.mxu0 0
      %316 = vmatpush1.bf16.msra.mxu0 0
      %317 = vmatprep.subr.bf16.mxu0 0
      %318 = vmatpush1.bf16.msra.mxu0 0
      %319 = vmatprep.subr.bf16.mxu0 0
      %320 = vmatpush1.bf16.msra.mxu0 0
      %321 = vmatprep.subr.bf16.mxu0 0
      %322 = vmatpush1.bf16.msra.mxu0 0
      %323 = vmatprep.subr.bf16.mxu0 0
      %324 = vmatpush1.bf16.msra.mxu0 0
      %325 = vmatprep.subr.bf16.mxu0 0
      %326 = vmatpush1.bf16.msra.mxu0 0
      %327 = vmatprep.subr.bf16.mxu0 0
      %328 = vmatpush1.bf16.msra.mxu0 %v311
      %329 = vmatprep.subr.bf16.mxu0 0
      %330 = vmatpush2.bf16.msra.mxu0 0
      %331 = vmatprep.subr.bf16.mxu0 0
      %332 = vmatpush2.bf16.msra.mxu0 0
      %333 = vmatprep.subr.bf16.mxu0 0
      %334 = vmatpush2.bf16.msra.mxu0 0
      %335 = vmatprep.subr.bf16.mxu0 0
      %336 = vmatpush2.bf16.msra.mxu0 0
      %337 = vmatprep.subr.bf16.mxu0 0
      %338 = vmatpush2.bf16.msra.mxu0 0
      %339 = vmatprep.subr.bf16.mxu0 0
      %340 = vmatpush2.bf16.msra.mxu0 0
      %341 = vmatprep.subr.bf16.mxu0 0
      %342 = vmatpush2.bf16.msra.mxu0 0
      %343 = vmatprep.subr.bf16.mxu0 0
      %344 = vmatpush2.bf16.msra.mxu0 0
      %345 = vmatprep.mubr.bf16.mxu0 0
      %346 = vmatmul.mubr.bf16.gmra.mxu0 %v298
      %v347 = vpop.f32.mrf.mxu0
      %v348 = vadd.f32 0.0, %v347
      %v349 = vpop.f32.mrf.mxu0
      %v350 = vpop.f32.mrf.mxu0
      %v351 = vadd.f32 0.0, %v350
      %v352 = vpop.f32.mrf.mxu0
      %353 = vmatprep.mubr.bf16.mxu0 0
      %354 = vmatmul.mubr.bf16.gmra.mxu0 %v301
      %v355 = vpop.f32.mrf.mxu0
      %v356 = vadd.f32 0.0, %v355
      %v357 = vpop.f32.mrf.mxu0
      %v358 = vpop.f32.mrf.mxu0
      %v359 = vadd.f32 0.0, %v358
      %v360 = vpop.f32.mrf.mxu0
      %361 = vmatprep.mubr.bf16.mxu0 0
      %362 = vmatmul.mubr.bf16.gmra.mxu0 %v304
      %v363 = vpop.f32.mrf.mxu0
      %v364 = vadd.f32 0.0, %v363
      %v365 = vpop.f32.mrf.mxu0
      %v366 = vpop.f32.mrf.mxu0
      %v367 = vadd.f32 0.0, %v366
      %v368 = vpop.f32.mrf.mxu0
      %369 = vmatprep.mubr.bf16.mxu0 0
      %370 = vmatmul.mubr.bf16.gmra.mxu0 %v307
      %v371 = vpop.f32.mrf.mxu0
      %v372 = vadd.f32 0.0, %v371
      %v373 = vpop.f32.mrf.mxu0
      %v374 = vpop.f32.mrf.mxu0
      %v375 = vadd.f32 0.0, %v374
      %v376 = vpop.f32.mrf.mxu0
      %377 = vdwg.mxu0
      %v378 = vadd.f32 %v268, %v348
      %v379 = vadd.f32 %v269, %v351
      %v380 = vadd.f32 %v270, %v356
      %v381 = vadd.f32 %v271, %v359
      %v382 = vadd.f32 %v272, %v364
      %v383 = vadd.f32 %v273, %v367
      %v384 = vadd.f32 %v274, %v372
      %v385 = vadd.f32 %v275, %v375
      %vm386 = vcmask 64512
      %387 = vst.msk [vmem:[#allocation2] sm:$0xff] %vm386, %v378
      %388 = vst.msk [vmem:[#allocation2 + $0x8] sm:$0xff] %vm386, %v379
      %389 = vst.msk [vmem:[#allocation2 + $0x10] sm:$0xff] %vm386, %v380
      %390 = vst.msk [vmem:[#allocation2 + $0x18] sm:$0xff] %vm386, %v381
      %391 = vst.msk [vmem:[#allocation2 + $0x20] sm:$0xff] %vm386, %v382
      %392 = vst.msk [vmem:[#allocation2 + $0x28] sm:$0xff] %vm386, %v383
      %393 = vst.msk [vmem:[#allocation2 + $0x30] sm:$0xff] %vm386, %v384
      %394 = vst.msk [vmem:[#allocation2 + $0x38] sm:$0xff] %vm386, %v385
      %v395 = vld [vmem:[%s221] sm:$0xf]
      %v396 = vld [vmem:[%s221 + $0x4] sm:$0x1]
      %v397 = vld [vmem:[%s221 + $0x8] sm:$0xf]
      %v398 = vld [vmem:[%s221 + $0xc] sm:$0x1]
      %v399 = vld [vmem:[%s221 + $0x10] sm:$0xf]
      %v400 = vld [vmem:[%s221 + $0x14] sm:$0x1]
      %v401 = vld [vmem:[%s221 + $0x18] sm:$0xf]
      %v402 = vld [vmem:[%s221 + $0x1c] sm:$0x1]
      %v403 = vld [vmem:[%s221 + $0x20] sm:$0xf]
      %v404 = vld [vmem:[%s221 + $0x24] sm:$0x1]
      %v405 = vld [vmem:[%s221 + $0x28] sm:$0xf]
      %v406 = vld [vmem:[%s221 + $0x2c] sm:$0x1]
      %v407 = vld [vmem:[%s221 + $0x30] sm:$0xf]
      %v408 = vld [vmem:[%s221 + $0x34] sm:$0x1]
      %v409 = vld [vmem:[%s221 + $0x38] sm:$0xf]
      %v410 = vld [vmem:[%s221 + $0x3c] sm:$0x1]
      %vm411 = vsmask.f32 3328
      %vm412 = vsmask.f32 7440
      %vm413 = vmor %vm411, %vm412
      %v415 = vshrl.u32 %v395, 16
      %v417 = vrot.slane %v415, 4
      %v418 = vshll.u32 %v395, 16
      %v420 = vrot.slane %v418, 5
      %v421 = vor.u32 %v417, %v420
      %v422 = vrot.slane %v421, 4
      %v424 = vshll.u32 %v396, 16
      %v426 = vrot.slane %v424, 5
      %v427 = vsel %vm413, %v422, %v426
      %v429 = vshrl.u32 %v397, 16
      %v431 = vrot.slane %v429, 4
      %v432 = vshll.u32 %v397, 16
      %v434 = vrot.slane %v432, 5
      %v435 = vor.u32 %v431, %v434
      %v436 = vrot.slane %v435, 4
      %v438 = vshll.u32 %v398, 16
      %v440 = vrot.slane %v438, 5
      %v441 = vsel %vm413, %v436, %v440
      %v443 = vshrl.u32 %v399, 16
      %v445 = vrot.slane %v443, 4
      %v446 = vshll.u32 %v399, 16
      %v448 = vrot.slane %v446, 5
      %v449 = vor.u32 %v445, %v448
      %v450 = vrot.slane %v449, 4
      %v452 = vshll.u32 %v400, 16
      %v454 = vrot.slane %v452, 5
      %v455 = vsel %vm413, %v450, %v454
      %v457 = vshrl.u32 %v401, 16
      %v459 = vrot.slane %v457, 4
      %v460 = vshll.u32 %v401, 16
      %v462 = vrot.slane %v460, 5
      %v463 = vor.u32 %v459, %v462
      %v464 = vrot.slane %v463, 4
      %v466 = vshll.u32 %v402, 16
      %v468 = vrot.slane %v466, 5
      %v469 = vsel %vm413, %v464, %v468
      %v471 = vshrl.u32 %v403, 16
      %v473 = vrot.slane %v471, 4
      %v474 = vshll.u32 %v403, 16
      %v476 = vrot.slane %v474, 5
      %v477 = vor.u32 %v473, %v476
      %v478 = vrot.slane %v477, 4
      %v480 = vshll.u32 %v404, 16
      %v482 = vrot.slane %v480, 5
      %v483 = vsel %vm413, %v478, %v482
      %v485 = vshrl.u32 %v405, 16
      %v487 = vrot.slane %v485, 4
      %v488 = vshll.u32 %v405, 16
      %v490 = vrot.slane %v488, 5
      %v491 = vor.u32 %v487, %v490
      %v492 = vrot.slane %v491, 4
      %v494 = vshll.u32 %v406, 16
      %v496 = vrot.slane %v494, 5
      %v497 = vsel %vm413, %v492, %v496
      %v499 = vshrl.u32 %v407, 16
      %v501 = vrot.slane %v499, 4
      %v502 = vshll.u32 %v407, 16
      %v504 = vrot.slane %v502, 5
      %v505 = vor.u32 %v501, %v504
      %v506 = vrot.slane %v505, 4
      %v508 = vshll.u32 %v408, 16
      %v510 = vrot.slane %v508, 5
      %v511 = vsel %vm413, %v506, %v510
      %v513 = vshrl.u32 %v409, 16
      %v515 = vrot.slane %v513, 4
      %v516 = vshll.u32 %v409, 16
      %v518 = vrot.slane %v516, 5
      %v519 = vor.u32 %v515, %v518
      %v520 = vrot.slane %v519, 4
      %v522 = vshll.u32 %v410, 16
      %v524 = vrot.slane %v522, 5
      %v525 = vsel %vm413, %v520, %v524
      %s526 = sadd.s32 %s264, 1
      %s527 = smul.addr %s526, 2
      %s528 = scalar_lea.vmem %s1, %s527
      %v529 = vld [vmem:[%s528] sm:$0x3]
      %v530 = vld [vmem:[#allocation2] sm:$0xff]
      %v531 = vld [vmem:[#allocation2 + $0x8] sm:$0xff]
      %v532 = vld [vmem:[#allocation2 + $0x10] sm:$0xff]
      %v533 = vld [vmem:[#allocation2 + $0x18] sm:$0xff]
      %v534 = vld [vmem:[#allocation2 + $0x20] sm:$0xff]
      %v535 = vld [vmem:[#allocation2 + $0x28] sm:$0xff]
      %v536 = vld [vmem:[#allocation2 + $0x30] sm:$0xff]
      %v537 = vld [vmem:[#allocation2 + $0x38] sm:$0xff]
      %v538 = vunpack.c.l.b16 %v427
      %v539 = vunpack.c.l.b16 %v441
      %v540 = vunpack.c.l.b16 %v455
      %v541 = vunpack.c.l.b16 %v469
      %v542 = vunpack.c.l.b16 %v483
      %v543 = vunpack.c.l.b16 %v497
      %v544 = vunpack.c.l.b16 %v511
      %v545 = vunpack.c.l.b16 %v525
      %v546 = vpack.c.b16 %v539, %v538
      %v547 = vpack.c.b16 %v541, %v540
      %v548 = vpack.c.b16 %v543, %v542
      %v549 = vpack.c.b16 %v545, %v544
      %v551 = vsel %vm296, %v546, 0
      %v554 = vsel %vm296, %v547, 0
      %v557 = vsel %vm296, %v548, 0
      %v560 = vsel %vm296, %v549, 0
      %v563 = vsel %vm309, %v529, 0
      %565 = vmatprep.subr.bf16.mxu0 0
      %566 = vmatpush1.bf16.msra.mxu0 0
      %567 = vmatprep.subr.bf16.mxu0 0
      %568 = vmatpush1.bf16.msra.mxu0 0
      %569 = vmatprep.subr.bf16.mxu0 0
      %570 = vmatpush1.bf16.msra.mxu0 0
      %571 = vmatprep.subr.bf16.mxu0 0
      %572 = vmatpush1.bf16.msra.mxu0 0
      %573 = vmatprep.subr.bf16.mxu0 0
      %574 = vmatpush1.bf16.msra.mxu0 0
      %575 = vmatprep.subr.bf16.mxu0 0
      %576 = vmatpush1.bf16.msra.mxu0 0
      %577 = vmatprep.subr.bf16.mxu0 0
      %578 = vmatpush1.bf16.msra.mxu0 0
      %579 = vmatprep.subr.bf16.mxu0 0
      %580 = vmatpush1.bf16.msra.mxu0 %v563
      %581 = vmatprep.subr.bf16.mxu0 0
      %582 = vmatpush2.bf16.msra.mxu0 0
      %583 = vmatprep.subr.bf16.mxu0 0
      %584 = vmatpush2.bf16.msra.mxu0 0
      %585 = vmatprep.subr.bf16.mxu0 0
      %586 = vmatpush2.bf16.msra.mxu0 0
      %587 = vmatprep.subr.bf16.mxu0 0
      %588 = vmatpush2.bf16.msra.mxu0 0
      %589 = vmatprep.subr.bf16.mxu0 0
      %590 = vmatpush2.bf16.msra.mxu0 0
      %591 = vmatprep.subr.bf16.mxu0 0
      %592 = vmatpush2.bf16.msra.mxu0 0
      %593 = vmatprep.subr.bf16.mxu0 0
      %594 = vmatpush2.bf16.msra.mxu0 0
      %595 = vmatprep.subr.bf16.mxu0 0
      %596 = vmatpush2.bf16.msra.mxu0 0
      %597 = vmatprep.mubr.bf16.mxu0 0
      %598 = vmatmul.mubr.bf16.gmra.mxu0 %v551
      %v599 = vpop.f32.mrf.mxu0
      %v600 = vadd.f32 0.0, %v599
      %v601 = vpop.f32.mrf.mxu0
      %v602 = vpop.f32.mrf.mxu0
      %v603 = vadd.f32 0.0, %v602
      %v604 = vpop.f32.mrf.mxu0
      %605 = vmatprep.mubr.bf16.mxu0 0
      %606 = vmatmul.mubr.bf16.gmra.mxu0 %v554
      %v607 = vpop.f32.mrf.mxu0
      %v608 = vadd.f32 0.0, %v607
      %v609 = vpop.f32.mrf.mxu0
      %v610 = vpop.f32.mrf.mxu0
      %v611 = vadd.f32 0.0, %v610
      %v612 = vpop.f32.mrf.mxu0
      %613 = vmatprep.mubr.bf16.mxu0 0
      %614 = vmatmul.mubr.bf16.gmra.mxu0 %v557
      %v615 = vpop.f32.mrf.mxu0
      %v616 = vadd.f32 0.0, %v615
      %v617 = vpop.f32.mrf.mxu0
      %v618 = vpop.f32.mrf.mxu0
      %v619 = vadd.f32 0.0, %v618
      %v620 = vpop.f32.mrf.mxu0
      %621 = vmatprep.mubr.bf16.mxu0 0
      %622 = vmatmul.mubr.bf16.gmra.mxu0 %v560
      %v623 = vpop.f32.mrf.mxu0
      %v624 = vadd.f32 0.0, %v623
      %v625 = vpop.f32.mrf.mxu0
      %v626 = vpop.f32.mrf.mxu0
      %v627 = vadd.f32 0.0, %v626
      %v628 = vpop.f32.mrf.mxu0
      %629 = vdwg.mxu0
      %v630 = vadd.f32 %v530, %v600
      %v631 = vadd.f32 %v531, %v603
      %v632 = vadd.f32 %v532, %v608
      %v633 = vadd.f32 %v533, %v611
      %v634 = vadd.f32 %v534, %v616
      %v635 = vadd.f32 %v535, %v619
      %v636 = vadd.f32 %v536, %v624
      %v637 = vadd.f32 %v537, %v627
      %638 = vst.msk [vmem:[#allocation2] sm:$0xff] %vm386, %v630
      %639 = vst.msk [vmem:[#allocation2 + $0x8] sm:$0xff] %vm386, %v631
      %640 = vst.msk [vmem:[#allocation2 + $0x10] sm:$0xff] %vm386, %v632
      %641 = vst.msk [vmem:[#allocation2 + $0x18] sm:$0xff] %vm386, %v633
      %642 = vst.msk [vmem:[#allocation2 + $0x20] sm:$0xff] %vm386, %v634
      %643 = vst.msk [vmem:[#allocation2 + $0x28] sm:$0xff] %vm386, %v635
      %644 = vst.msk [vmem:[#allocation2 + $0x30] sm:$0xff] %vm386, %v636
      %645 = vst.msk [vmem:[#allocation2 + $0x38] sm:$0xff] %vm386, %v637
      %v646 = vld [vmem:[%s221] sm:$0xe]
      %v647 = vld [vmem:[%s221 + $0x4] sm:$0x1]
      %v648 = vld [vmem:[%s221 + $0x8] sm:$0xe]
      %v649 = vld [vmem:[%s221 + $0xc] sm:$0x1]
      %v650 = vld [vmem:[%s221 + $0x10] sm:$0xe]
      %v651 = vld [vmem:[%s221 + $0x14] sm:$0x1]
      %v652 = vld [vmem:[%s221 + $0x18] sm:$0xe]
      %v653 = vld [vmem:[%s221 + $0x1c] sm:$0x1]
      %v654 = vld [vmem:[%s221 + $0x20] sm:$0xe]
      %v655 = vld [vmem:[%s221 + $0x24] sm:$0x1]
      %v656 = vld [vmem:[%s221 + $0x28] sm:$0xe]
      %v657 = vld [vmem:[%s221 + $0x2c] sm:$0x1]
      %v658 = vld [vmem:[%s221 + $0x30] sm:$0xe]
      %v659 = vld [vmem:[%s221 + $0x34] sm:$0x1]
      %v660 = vld [vmem:[%s221 + $0x38] sm:$0xe]
      %v661 = vld [vmem:[%s221 + $0x3c] sm:$0x1]
      %vm678 = vcmask 1042432
      %vm679 = vcmask 1046532
      %vm680 = vmor %vm678, %vm679
      %v681 = vrot.slane %v646, 5
      %v682 = vrot.slane %v681, 4
      %v683 = vrot.slane %v647, 5
      %v684 = vsel %vm680, %v682, %v683
      %v685 = vrot.slane %v648, 5
      %v686 = vrot.slane %v685, 4
      %v687 = vrot.slane %v649, 5
      %v688 = vsel %vm680, %v686, %v687
      %v689 = vrot.slane %v650, 5
      %v690 = vrot.slane %v689, 4
      %v691 = vrot.slane %v651, 5
      %v692 = vsel %vm680, %v690, %v691
      %v693 = vrot.slane %v652, 5
      %v694 = vrot.slane %v693, 4
      %v695 = vrot.slane %v653, 5
      %v696 = vsel %vm680, %v694, %v695
      %v697 = vrot.slane %v654, 5
      %v698 = vrot.slane %v697, 4
      %v699 = vrot.slane %v655, 5
      %v700 = vsel %vm680, %v698, %v699
      %v701 = vrot.slane %v656, 5
      %v702 = vrot.slane %v701, 4
      %v703 = vrot.slane %v657, 5
      %v704 = vsel %vm680, %v702, %v703
      %v705 = vrot.slane %v658, 5
      %v706 = vrot.slane %v705, 4
      %v707 = vrot.slane %v659, 5
      %v708 = vsel %vm680, %v706, %v707
      %v709 = vrot.slane %v660, 5
      %v710 = vrot.slane %v709, 4
      %v711 = vrot.slane %v661, 5
      %v712 = vsel %vm680, %v710, %v711
      %s713 = sadd.s32 %s264, 2
      %s714 = smul.addr %s713, 2
      %s715 = scalar_lea.vmem %s1, %s714
      %v716 = vld [vmem:[%s715] sm:$0x3]
      %v717 = vld [vmem:[#allocation2] sm:$0xff]
      %v718 = vld [vmem:[#allocation2 + $0x8] sm:$0xff]
      %v719 = vld [vmem:[#allocation2 + $0x10] sm:$0xff]
      %v720 = vld [vmem:[#allocation2 + $0x18] sm:$0xff]
      %v721 = vld [vmem:[#allocation2 + $0x20] sm:$0xff]
      %v722 = vld [vmem:[#allocation2 + $0x28] sm:$0xff]
      %v723 = vld [vmem:[#allocation2 + $0x30] sm:$0xff]
      %v724 = vld [vmem:[#allocation2 + $0x38] sm:$0xff]
      %v725 = vunpack.c.l.b16 %v684
      %v726 = vunpack.c.l.b16 %v688
      %v727 = vunpack.c.l.b16 %v692
      %v728 = vunpack.c.l.b16 %v696
      %v729 = vunpack.c.l.b16 %v700
      %v730 = vunpack.c.l.b16 %v704
      %v731 = vunpack.c.l.b16 %v708
      %v732 = vunpack.c.l.b16 %v712
      %v733 = vpack.c.b16 %v726, %v725
      %v734 = vpack.c.b16 %v728, %v727
      %v735 = vpack.c.b16 %v730, %v729
      %v736 = vpack.c.b16 %v732, %v731
      %v738 = vsel %vm296, %v733, 0
      %v741 = vsel %vm296, %v734, 0
      %v744 = vsel %vm296, %v735, 0
      %v747 = vsel %vm296, %v736, 0
      %v750 = vsel %vm309, %v716, 0
      %752 = vmatprep.subr.bf16.mxu0 0
      %753 = vmatpush1.bf16.msra.mxu0 0
      %754 = vmatprep.subr.bf16.mxu0 0
      %755 = vmatpush1.bf16.msra.mxu0 0
      %756 = vmatprep.subr.bf16.mxu0 0
      %757 = vmatpush1.bf16.msra.mxu0 0
      %758 = vmatprep.subr.bf16.mxu0 0
      %759 = vmatpush1.bf16.msra.mxu0 0
      %760 = vmatprep.subr.bf16.mxu0 0
      %761 = vmatpush1.bf16.msra.mxu0 0
      %762 = vmatprep.subr.bf16.mxu0 0
      %763 = vmatpush1.bf16.msra.mxu0 0
      %764 = vmatprep.subr.bf16.mxu0 0
      %765 = vmatpush1.bf16.msra.mxu0 0
      %766 = vmatprep.subr.bf16.mxu0 0
      %767 = vmatpush1.bf16.msra.mxu0 %v750
      %768 = vmatprep.subr.bf16.mxu0 0
      %769 = vmatpush2.bf16.msra.mxu0 0
      %770 = vmatprep.subr.bf16.mxu0 0
      %771 = vmatpush2.bf16.msra.mxu0 0
      %772 = vmatprep.subr.bf16.mxu0 0
      %773 = vmatpush2.bf16.msra.mxu0 0
      %774 = vmatprep.subr.bf16.mxu0 0
      %775 = vmatpush2.bf16.msra.mxu0 0
      %776 = vmatprep.subr.bf16.mxu0 0
      %777 = vmatpush2.bf16.msra.mxu0 0
      %778 = vmatprep.subr.bf16.mxu0 0
      %779 = vmatpush2.bf16.msra.mxu0 0
      %780 = vmatprep.subr.bf16.mxu0 0
      %781 = vmatpush2.bf16.msra.mxu0 0
      %782 = vmatprep.subr.bf16.mxu0 0
      %783 = vmatpush2.bf16.msra.mxu0 0
      %784 = vmatprep.mubr.bf16.mxu0 0
      %785 = vmatmul.mubr.bf16.gmra.mxu0 %v738
      %v786 = vpop.f32.mrf.mxu0
      %v787 = vadd.f32 0.0, %v786
      %v788 = vpop.f32.mrf.mxu0
      %v789 = vpop.f32.mrf.mxu0
      %v790 = vadd.f32 0.0, %v789
      %v791 = vpop.f32.mrf.mxu0
      %792 = vmatprep.mubr.bf16.mxu0 0
      %793 = vmatmul.mubr.bf16.gmra.mxu0 %v741
      %v794 = vpop.f32.mrf.mxu0
      %v795 = vadd.f32 0.0, %v794
      %v796 = vpop.f32.mrf.mxu0
      %v797 = vpop.f32.mrf.mxu0
      %v798 = vadd.f32 0.0, %v797
      %v799 = vpop.f32.mrf.mxu0
      %800 = vmatprep.mubr.bf16.mxu0 0
      %801 = vmatmul.mubr.bf16.gmra.mxu0 %v744
      %v802 = vpop.f32.mrf.mxu0
      %v803 = vadd.f32 0.0, %v802
      %v804 = vpop.f32.mrf.mxu0
      %v805 = vpop.f32.mrf.mxu0
      %v806 = vadd.f32 0.0, %v805
      %v807 = vpop.f32.mrf.mxu0
      %808 = vmatprep.mubr.bf16.mxu0 0
      %809 = vmatmul.mubr.bf16.gmra.mxu0 %v747
      %v810 = vpop.f32.mrf.mxu0
      %v811 = vadd.f32 0.0, %v810
      %v812 = vpop.f32.mrf.mxu0
      %v813 = vpop.f32.mrf.mxu0
      %v814 = vadd.f32 0.0, %v813
      %v815 = vpop.f32.mrf.mxu0
      %816 = vdwg.mxu0
      %v817 = vadd.f32 %v717, %v787
      %v818 = vadd.f32 %v718, %v790
      %v819 = vadd.f32 %v719, %v795
      %v820 = vadd.f32 %v720, %v798
      %v821 = vadd.f32 %v721, %v803
      %v822 = vadd.f32 %v722, %v806
      %v823 = vadd.f32 %v723, %v811
      %v824 = vadd.f32 %v724, %v814
      %825 = vst.msk [vmem:[#allocation2] sm:$0xff] %vm386, %v817
      %826 = vst.msk [vmem:[#allocation2 + $0x8] sm:$0xff] %vm386, %v818
      %827 = vst.msk [vmem:[#allocation2 + $0x10] sm:$0xff] %vm386, %v819
      %828 = vst.msk [vmem:[#allocation2 + $0x18] sm:$0xff] %vm386, %v820
      %829 = vst.msk [vmem:[#allocation2 + $0x20] sm:$0xff] %vm386, %v821
      %830 = vst.msk [vmem:[#allocation2 + $0x28] sm:$0xff] %vm386, %v822
      %831 = vst.msk [vmem:[#allocation2 + $0x30] sm:$0xff] %vm386, %v823
      %832 = vst.msk [vmem:[#allocation2 + $0x38] sm:$0xff] %vm386, %v824
      %s833 = scalar_lea.vmem %s221, 8
      %v834 = vld [vmem:[%s833] sm:$0xf]
      %v835 = vld [vmem:[%s833 + $0x8] sm:$0xf]
      %v836 = vld [vmem:[%s833 + $0x10] sm:$0xf]
      %v837 = vld [vmem:[%s833 + $0x18] sm:$0xf]
      %v838 = vld [vmem:[%s833 + $0x20] sm:$0xf]
      %v839 = vld [vmem:[%s833 + $0x28] sm:$0xf]
      %v840 = vld [vmem:[%s833 + $0x30] sm:$0xf]
      %v841 = vld [vmem:[%s833 + $0x38] sm:$0xf]
      %s842 = sadd.s32 %s264, 3
      %s843 = smul.addr %s842, 2
      %s844 = scalar_lea.vmem %s1, %s843
      %v845 = vld [vmem:[%s844] sm:$0x3]
      %v846 = vld [vmem:[#allocation2] sm:$0xff]
      %v847 = vld [vmem:[#allocation2 + $0x8] sm:$0xff]
      %v848 = vld [vmem:[#allocation2 + $0x10] sm:$0xff]
      %v849 = vld [vmem:[#allocation2 + $0x18] sm:$0xff]
      %v850 = vld [vmem:[#allocation2 + $0x20] sm:$0xff]
      %v851 = vld [vmem:[#allocation2 + $0x28] sm:$0xff]
      %v852 = vld [vmem:[#allocation2 + $0x30] sm:$0xff]
      %v853 = vld [vmem:[#allocation2 + $0x38] sm:$0xff]
      %v862 = vunpack.c.l.b16 %v834
      %v863 = vunpack.c.l.b16 %v835
      %v864 = vunpack.c.l.b16 %v836
      %v865 = vunpack.c.l.b16 %v837
      %v866 = vunpack.c.l.b16 %v838
      %v867 = vunpack.c.l.b16 %v839
      %v868 = vunpack.c.l.b16 %v840
      %v869 = vunpack.c.l.b16 %v841
      %v870 = vpack.c.b16 %v863, %v862
      %v871 = vpack.c.b16 %v865, %v864
      %v872 = vpack.c.b16 %v867, %v866
      %v873 = vpack.c.b16 %v869, %v868
      %v875 = vsel %vm296, %v870, 0
      %v878 = vsel %vm296, %v871, 0
      %v881 = vsel %vm296, %v872, 0
      %v884 = vsel %vm296, %v873, 0
      %v887 = vsel %vm309, %v845, 0
      %889 = vmatprep.subr.bf16.mxu0 0
      %890 = vmatpush1.bf16.msra.mxu0 0
      %891 = vmatprep.subr.bf16.mxu0 0
      %892 = vmatpush1.bf16.msra.mxu0 0
      %893 = vmatprep.subr.bf16.mxu0 0
      %894 = vmatpush1.bf16.msra.mxu0 0
      %895 = vmatprep.subr.bf16.mxu0 0
      %896 = vmatpush1.bf16.msra.mxu0 0
      %897 = vmatprep.subr.bf16.mxu0 0
      %898 = vmatpush1.bf16.msra.mxu0 0
      %899 = vmatprep.subr.bf16.mxu0 0
      %900 = vmatpush1.bf16.msra.mxu0 0
      %901 = vmatprep.subr.bf16.mxu0 0
      %902 = vmatpush1.bf16.msra.mxu0 0
      %903 = vmatprep.subr.bf16.mxu0 0
      %904 = vmatpush1.bf16.msra.mxu0 %v887
      %905 = vmatprep.subr.bf16.mxu0 0
      %906 = vmatpush2.bf16.msra.mxu0 0
      %907 = vmatprep.subr.bf16.mxu0 0
      %908 = vmatpush2.bf16.msra.mxu0 0
      %909 = vmatprep.subr.bf16.mxu0 0
      %910 = vmatpush2.bf16.msra.mxu0 0
      %911 = vmatprep.subr.bf16.mxu0 0
      %912 = vmatpush2.bf16.msra.mxu0 0
      %913 = vmatprep.subr.bf16.mxu0 0
      %914 = vmatpush2.bf16.msra.mxu0 0
      %915 = vmatprep.subr.bf16.mxu0 0
      %916 = vmatpush2.bf16.msra.mxu0 0
      %917 = vmatprep.subr.bf16.mxu0 0
      %918 = vmatpush2.bf16.msra.mxu0 0
      %919 = vmatprep.subr.bf16.mxu0 0
      %920 = vmatpush2.bf16.msra.mxu0 0
      %921 = vmatprep.mubr.bf16.mxu0 0
      %922 = vmatmul.mubr.bf16.gmra.mxu0 %v875
      %v923 = vpop.f32.mrf.mxu0
      %v924 = vadd.f32 0.0, %v923
      %v925 = vpop.f32.mrf.mxu0
      %v926 = vpop.f32.mrf.mxu0
      %v927 = vadd.f32 0.0, %v926
      %v928 = vpop.f32.mrf.mxu0
      %929 = vmatprep.mubr.bf16.mxu0 0
      %930 = vmatmul.mubr.bf16.gmra.mxu0 %v878
      %v931 = vpop.f32.mrf.mxu0
      %v932 = vadd.f32 0.0, %v931
      %v933 = vpop.f32.mrf.mxu0
      %v934 = vpop.f32.mrf.mxu0
      %v935 = vadd.f32 0.0, %v934
      %v936 = vpop.f32.mrf.mxu0
      %937 = vmatprep.mubr.bf16.mxu0 0
      %938 = vmatmul.mubr.bf16.gmra.mxu0 %v881
      %v939 = vpop.f32.mrf.mxu0
      %v940 = vadd.f32 0.0, %v939
      %v941 = vpop.f32.mrf.mxu0
      %v942 = vpop.f32.mrf.mxu0
      %v943 = vadd.f32 0.0, %v942
      %v944 = vpop.f32.mrf.mxu0
      %945 = vmatprep.mubr.bf16.mxu0 0
      %946 = vmatmul.mubr.bf16.gmra.mxu0 %v884
      %v947 = vpop.f32.mrf.mxu0
      %v948 = vadd.f32 0.0, %v947
      %v949 = vpop.f32.mrf.mxu0
      %v950 = vpop.f32.mrf.mxu0
      %v951 = vadd.f32 0.0, %v950
      %v952 = vpop.f32.mrf.mxu0
      %953 = vdwg.mxu0
      %v954 = vadd.f32 %v846, %v924
      %v955 = vadd.f32 %v847, %v927
      %v956 = vadd.f32 %v848, %v932
      %v957 = vadd.f32 %v849, %v935
      %v958 = vadd.f32 %v850, %v940
      %v959 = vadd.f32 %v851, %v943
      %v960 = vadd.f32 %v852, %v948
      %v961 = vadd.f32 %v853, %v951
      %962 = vst.msk [vmem:[#allocation2] sm:$0xff] %vm386, %v954
      %963 = vst.msk [vmem:[#allocation2 + $0x8] sm:$0xff] %vm386, %v955
      %964 = vst.msk [vmem:[#allocation2 + $0x10] sm:$0xff] %vm386, %v956
      %965 = vst.msk [vmem:[#allocation2 + $0x18] sm:$0xff] %vm386, %v957
      %966 = vst.msk [vmem:[#allocation2 + $0x20] sm:$0xff] %vm386, %v958
      %967 = vst.msk [vmem:[#allocation2 + $0x28] sm:$0xff] %vm386, %v959
      %968 = vst.msk [vmem:[#allocation2 + $0x30] sm:$0xff] %vm386, %v960
      %969 = vst.msk [vmem:[#allocation2 + $0x38] sm:$0xff] %vm386, %v961
      %v970 = vld [vmem:[%s833] sm:$0xf]
      %v971 = vld [vmem:[%s833 + $0x4] sm:$0x1]
      %v972 = vld [vmem:[%s833 + $0x8] sm:$0xf]
      %v973 = vld [vmem:[%s833 + $0xc] sm:$0x1]
      %v974 = vld [vmem:[%s833 + $0x10] sm:$0xf]
      %v975 = vld [vmem:[%s833 + $0x14] sm:$0x1]
      %v976 = vld [vmem:[%s833 + $0x18] sm:$0xf]
      %v977 = vld [vmem:[%s833 + $0x1c] sm:$0x1]
      %v978 = vld [vmem:[%s833 + $0x20] sm:$0xf]
      %v979 = vld [vmem:[%s833 + $0x24] sm:$0x1]
      %v980 = vld [vmem:[%s833 + $0x28] sm:$0xf]
      %v981 = vld [vmem:[%s833 + $0x2c] sm:$0x1]
      %v982 = vld [vmem:[%s833 + $0x30] sm:$0xf]
      %v983 = vld [vmem:[%s833 + $0x34] sm:$0x1]
      %v984 = vld [vmem:[%s833 + $0x38] sm:$0xf]
      %v985 = vld [vmem:[%s833 + $0x3c] sm:$0x1]
      %v987 = vshrl.u32 %v970, 16
      %v989 = vrot.slane %v987, 4
      %v990 = vshll.u32 %v970, 16
      %v992 = vrot.slane %v990, 5
      %v993 = vor.u32 %v989, %v992
      %v994 = vrot.slane %v993, 4
      %v996 = vshll.u32 %v971, 16
      %v998 = vrot.slane %v996, 5
      %v999 = vsel %vm413, %v994, %v998
      %v1001 = vshrl.u32 %v972, 16
      %v1003 = vrot.slane %v1001, 4
      %v1004 = vshll.u32 %v972, 16
      %v1006 = vrot.slane %v1004, 5
      %v1007 = vor.u32 %v1003, %v1006
      %v1008 = vrot.slane %v1007, 4
      %v1010 = vshll.u32 %v973, 16
      %v1012 = vrot.slane %v1010, 5
      %v1013 = vsel %vm413, %v1008, %v1012
      %v1015 = vshrl.u32 %v974, 16
      %v1017 = vrot.slane %v1015, 4
      %v1018 = vshll.u32 %v974, 16
      %v1020 = vrot.slane %v1018, 5
      %v1021 = vor.u32 %v1017, %v1020
      %v1022 = vrot.slane %v1021, 4
      %v1024 = vshll.u32 %v975, 16
      %v1026 = vrot.slane %v1024, 5
      %v1027 = vsel %vm413, %v1022, %v1026
      %v1029 = vshrl.u32 %v976, 16
      %v1031 = vrot.slane %v1029, 4
      %v1032 = vshll.u32 %v976, 16
      %v1034 = vrot.slane %v1032, 5
      %v1035 = vor.u32 %v1031, %v1034
      %v1036 = vrot.slane %v1035, 4
      %v1038 = vshll.u32 %v977, 16
      %v1040 = vrot.slane %v1038, 5
      %v1041 = vsel %vm413, %v1036, %v1040
      %v1043 = vshrl.u32 %v978, 16
      %v1045 = vrot.slane %v1043, 4
      %v1046 = vshll.u32 %v978, 16
      %v1048 = vrot.slane %v1046, 5
      %v1049 = vor.u32 %v1045, %v1048
      %v1050 = vrot.slane %v1049, 4
      %v1052 = vshll.u32 %v979, 16
      %v1054 = vrot.slane %v1052, 5
      %v1055 = vsel %vm413, %v1050, %v1054
      %v1057 = vshrl.u32 %v980, 16
      %v1059 = vrot.slane %v1057, 4
      %v1060 = vshll.u32 %v980, 16
      %v1062 = vrot.slane %v1060, 5
      %v1063 = vor.u32 %v1059, %v1062
      %v1064 = vrot.slane %v1063, 4
      %v1066 = vshll.u32 %v981, 16
      %v1068 = vrot.slane %v1066, 5
      %v1069 = vsel %vm413, %v1064, %v1068
      %v1071 = vshrl.u32 %v982, 16
      %v1073 = vrot.slane %v1071, 4
      %v1074 = vshll.u32 %v982, 16
      %v1076 = vrot.slane %v1074, 5
      %v1077 = vor.u32 %v1073, %v1076
      %v1078 = vrot.slane %v1077, 4
      %v1080 = vshll.u32 %v983, 16
      %v1082 = vrot.slane %v1080, 5
      %v1083 = vsel %vm413, %v1078, %v1082
      %v1085 = vshrl.u32 %v984, 16
      %v1087 = vrot.slane %v1085, 4
      %v1088 = vshll.u32 %v984, 16
      %v1090 = vrot.slane %v1088, 5
      %v1091 = vor.u32 %v1087, %v1090
      %v1092 = vrot.slane %v1091, 4
      %v1094 = vshll.u32 %v985, 16
      %v1096 = vrot.slane %v1094, 5
      %v1097 = vsel %vm413, %v1092, %v1096
      %s1098 = sadd.s32 %s264, 4
      %s1099 = smul.addr %s1098, 2
      %s1100 = scalar_lea.vmem %s1, %s1099
      %v1101 = vld [vmem:[%s1100] sm:$0x3]
      %v1102 = vld [vmem:[#allocation2] sm:$0xff]
      %v1103 = vld [vmem:[#allocation2 + $0x8] sm:$0xff]
      %v1104 = vld [vmem:[#allocation2 + $0x10] sm:$0xff]
      %v1105 = vld [vmem:[#allocation2 + $0x18] sm:$0xff]
      %v1106 = vld [vmem:[#allocation2 + $0x20] sm:$0xff]
      %v1107 = vld [vmem:[#allocation2 + $0x28] sm:$0xff]
      %v1108 = vld [vmem:[#allocation2 + $0x30] sm:$0xff]
      %v1109 = vld [vmem:[#allocation2 + $0x38] sm:$0xff]
      %v1110 = vunpack.c.l.b16 %v999
      %v1111 = vunpack.c.l.b16 %v1013
      %v1112 = vunpack.c.l.b16 %v1027
      %v1113 = vunpack.c.l.b16 %v1041
      %v1114 = vunpack.c.l.b16 %v1055
      %v1115 = vunpack.c.l.b16 %v1069
      %v1116 = vunpack.c.l.b16 %v1083
      %v1117 = vunpack.c.l.b16 %v1097
      %v1118 = vpack.c.b16 %v1111, %v1110
      %v1119 = vpack.c.b16 %v1113, %v1112
      %v1120 = vpack.c.b16 %v1115, %v1114
      %v1121 = vpack.c.b16 %v1117, %v1116
      %v1123 = vsel %vm296, %v1118, 0
      %v1126 = vsel %vm296, %v1119, 0
      %v1129 = vsel %vm296, %v1120, 0
      %v1132 = vsel %vm296, %v1121, 0
      %v1135 = vsel %vm309, %v1101, 0
      %1137 = vmatprep.subr.bf16.mxu0 0
      %1138 = vmatpush1.bf16.msra.mxu0 0
      %1139 = vmatprep.subr.bf16.mxu0 0
      %1140 = vmatpush1.bf16.msra.mxu0 0
      %1141 = vmatprep.subr.bf16.mxu0 0
      %1142 = vmatpush1.bf16.msra.mxu0 0
      %1143 = vmatprep.subr.bf16.mxu0 0
      %1144 = vmatpush1.bf16.msra.mxu0 0
      %1145 = vmatprep.subr.bf16.mxu0 0
      %1146 = vmatpush1.bf16.msra.mxu0 0
      %1147 = vmatprep.subr.bf16.mxu0 0
      %1148 = vmatpush1.bf16.msra.mxu0 0
      %1149 = vmatprep.subr.bf16.mxu0 0
      %1150 = vmatpush1.bf16.msra.mxu0 0
      %1151 = vmatprep.subr.bf16.mxu0 0
      %1152 = vmatpush1.bf16.msra.mxu0 %v1135
      %1153 = vmatprep.subr.bf16.mxu0 0
      %1154 = vmatpush2.bf16.msra.mxu0 0
      %1155 = vmatprep.subr.bf16.mxu0 0
      %1156 = vmatpush2.bf16.msra.mxu0 0
      %1157 = vmatprep.subr.bf16.mxu0 0
      %1158 = vmatpush2.bf16.msra.mxu0 0
      %1159 = vmatprep.subr.bf16.mxu0 0
      %1160 = vmatpush2.bf16.msra.mxu0 0
      %1161 = vmatprep.subr.bf16.mxu0 0
      %1162 = vmatpush2.bf16.msra.mxu0 0
      %1163 = vmatprep.subr.bf16.mxu0 0
      %1164 = vmatpush2.bf16.msra.mxu0 0
      %1165 = vmatprep.subr.bf16.mxu0 0
      %1166 = vmatpush2.bf16.msra.mxu0 0
      %1167 = vmatprep.subr.bf16.mxu0 0
      %1168 = vmatpush2.bf16.msra.mxu0 0
      %1169 = vmatprep.mubr.bf16.mxu0 0
      %1170 = vmatmul.mubr.bf16.gmra.mxu0 %v1123
      %v1171 = vpop.f32.mrf.mxu0
      %v1172 = vadd.f32 0.0, %v1171
      %v1173 = vpop.f32.mrf.mxu0
      %v1174 = vpop.f32.mrf.mxu0
      %v1175 = vadd.f32 0.0, %v1174
      %v1176 = vpop.f32.mrf.mxu0
      %1177 = vmatprep.mubr.bf16.mxu0 0
      %1178 = vmatmul.mubr.bf16.gmra.mxu0 %v1126
      %v1179 = vpop.f32.mrf.mxu0
      %v1180 = vadd.f32 0.0, %v1179
      %v1181 = vpop.f32.mrf.mxu0
      %v1182 = vpop.f32.mrf.mxu0
      %v1183 = vadd.f32 0.0, %v1182
      %v1184 = vpop.f32.mrf.mxu0
      %1185 = vmatprep.mubr.bf16.mxu0 0
      %1186 = vmatmul.mubr.bf16.gmra.mxu0 %v1129
      %v1187 = vpop.f32.mrf.mxu0
      %v1188 = vadd.f32 0.0, %v1187
      %v1189 = vpop.f32.mrf.mxu0
      %v1190 = vpop.f32.mrf.mxu0
      %v1191 = vadd.f32 0.0, %v1190
      %v1192 = vpop.f32.mrf.mxu0
      %1193 = vmatprep.mubr.bf16.mxu0 0
      %1194 = vmatmul.mubr.bf16.gmra.mxu0 %v1132
      %v1195 = vpop.f32.mrf.mxu0
      %v1196 = vadd.f32 0.0, %v1195
      %v1197 = vpop.f32.mrf.mxu0
      %v1198 = vpop.f32.mrf.mxu0
      %v1199 = vadd.f32 0.0, %v1198
      %v1200 = vpop.f32.mrf.mxu0
      %1201 = vdwg.mxu0
      %v1202 = vadd.f32 %v1102, %v1172
      %v1203 = vadd.f32 %v1103, %v1175
      %v1204 = vadd.f32 %v1104, %v1180
      %v1205 = vadd.f32 %v1105, %v1183
      %v1206 = vadd.f32 %v1106, %v1188
      %v1207 = vadd.f32 %v1107, %v1191
      %v1208 = vadd.f32 %v1108, %v1196
      %v1209 = vadd.f32 %v1109, %v1199
      %1210 = vst.msk [vmem:[#allocation2] sm:$0xff] %vm386, %v1202
      %1211 = vst.msk [vmem:[#allocation2 + $0x8] sm:$0xff] %vm386, %v1203
      %1212 = vst.msk [vmem:[#allocation2 + $0x10] sm:$0xff] %vm386, %v1204
      %1213 = vst.msk [vmem:[#allocation2 + $0x18] sm:$0xff] %vm386, %v1205
      %1214 = vst.msk [vmem:[#allocation2 + $0x20] sm:$0xff] %vm386, %v1206
      %1215 = vst.msk [vmem:[#allocation2 + $0x28] sm:$0xff] %vm386, %v1207
      %1216 = vst.msk [vmem:[#allocation2 + $0x30] sm:$0xff] %vm386, %v1208
      %1217 = vst.msk [vmem:[#allocation2 + $0x38] sm:$0xff] %vm386, %v1209
      %v1218 = vld [vmem:[%s833] sm:$0xe]
      %v1219 = vld [vmem:[%s833 + $0x4] sm:$0x1]
      %v1220 = vld [vmem:[%s833 + $0x8] sm:$0xe]
      %v1221 = vld [vmem:[%s833 + $0xc] sm:$0x1]
      %v1222 = vld [vmem:[%s833 + $0x10] sm:$0xe]
      %v1223 = vld [vmem:[%s833 + $0x14] sm:$0x1]
      %v1224 = vld [vmem:[%s833 + $0x18] sm:$0xe]
      %v1225 = vld [vmem:[%s833 + $0x1c] sm:$0x1]
      %v1226 = vld [vmem:[%s833 + $0x20] sm:$0xe]
      %v1227 = vld [vmem:[%s833 + $0x24] sm:$0x1]
      %v1228 = vld [vmem:[%s833 + $0x28] sm:$0xe]
      %v1229 = vld [vmem:[%s833 + $0x2c] sm:$0x1]
      %v1230 = vld [vmem:[%s833 + $0x30] sm:$0xe]
      %v1231 = vld [vmem:[%s833 + $0x34] sm:$0x1]
      %v1232 = vld [vmem:[%s833 + $0x38] sm:$0xe]
      %v1233 = vld [vmem:[%s833 + $0x3c] sm:$0x1]
      %v1250 = vrot.slane %v1218, 5
      %v1251 = vrot.slane %v1250, 4
      %v1252 = vrot.slane %v1219, 5
      %v1253 = vsel %vm680, %v1251, %v1252
      %v1254 = vrot.slane %v1220, 5
      %v1255 = vrot.slane %v1254, 4
      %v1256 = vrot.slane %v1221, 5
      %v1257 = vsel %vm680, %v1255, %v1256
      %v1258 = vrot.slane %v1222, 5
      %v1259 = vrot.slane %v1258, 4
      %v1260 = vrot.slane %v1223, 5
      %v1261 = vsel %vm680, %v1259, %v1260
      %v1262 = vrot.slane %v1224, 5
      %v1263 = vrot.slane %v1262, 4
      %v1264 = vrot.slane %v1225, 5
      %v1265 = vsel %vm680, %v1263, %v1264
      %v1266 = vrot.slane %v1226, 5
      %v1267 = vrot.slane %v1266, 4
      %v1268 = vrot.slane %v1227, 5
      %v1269 = vsel %vm680, %v1267, %v1268
      %v1270 = vrot.slane %v1228, 5
      %v1271 = vrot.slane %v1270, 4
      %v1272 = vrot.slane %v1229, 5
      %v1273 = vsel %vm680, %v1271, %v1272
      %v1274 = vrot.slane %v1230, 5
      %v1275 = vrot.slane %v1274, 4
      %v1276 = vrot.slane %v1231, 5
      %v1277 = vsel %vm680, %v1275, %v1276
      %v1278 = vrot.slane %v1232, 5
      %v1279 = vrot.slane %v1278, 4
      %v1280 = vrot.slane %v1233, 5
      %v1281 = vsel %vm680, %v1279, %v1280
      %s1282 = sadd.s32 %s264, 5
      %s1283 = smul.addr %s1282, 2
      %s1284 = scalar_lea.vmem %s1, %s1283
      %v1285 = vld [vmem:[%s1284] sm:$0x3]
      %v1286 = vld [vmem:[#allocation2] sm:$0xff]
      %v1287 = vld [vmem:[#allocation2 + $0x8] sm:$0xff]
      %v1288 = vld [vmem:[#allocation2 + $0x10] sm:$0xff]
      %v1289 = vld [vmem:[#allocation2 + $0x18] sm:$0xff]
      %v1290 = vld [vmem:[#allocation2 + $0x20] sm:$0xff]
      %v1291 = vld [vmem:[#allocation2 + $0x28] sm:$0xff]
      %v1292 = vld [vmem:[#allocation2 + $0x30] sm:$0xff]
      %v1293 = vld [vmem:[#allocation2 + $0x38] sm:$0xff]
      %v1294 = vunpack.c.l.b16 %v1253
      %v1295 = vunpack.c.l.b16 %v1257
      %v1296 = vunpack.c.l.b16 %v1261
      %v1297 = vunpack.c.l.b16 %v1265
      %v1298 = vunpack.c.l.b16 %v1269
      %v1299 = vunpack.c.l.b16 %v1273
      %v1300 = vunpack.c.l.b16 %v1277
      %v1301 = vunpack.c.l.b16 %v1281
      %v1302 = vpack.c.b16 %v1295, %v1294
      %v1303 = vpack.c.b16 %v1297, %v1296
      %v1304 = vpack.c.b16 %v1299, %v1298
      %v1305 = vpack.c.b16 %v1301, %v1300
      %v1307 = vsel %vm296, %v1302, 0
      %v1310 = vsel %vm296, %v1303, 0
      %v1313 = vsel %vm296, %v1304, 0
      %v1316 = vsel %vm296, %v1305, 0
      %v1319 = vsel %vm309, %v1285, 0
      %1321 = vmatprep.subr.bf16.mxu0 0
      %1322 = vmatpush1.bf16.msra.mxu0 0
      %1323 = vmatprep.subr.bf16.mxu0 0
      %1324 = vmatpush1.bf16.msra.mxu0 0
      %1325 = vmatprep.subr.bf16.mxu0 0
      %1326 = vmatpush1.bf16.msra.mxu0 0
      %1327 = vmatprep.subr.bf16.mxu0 0
      %1328 = vmatpush1.bf16.msra.mxu0 0
      %1329 = vmatprep.subr.bf16.mxu0 0
      %1330 = vmatpush1.bf16.msra.mxu0 0
      %1331 = vmatprep.subr.bf16.mxu0 0
      %1332 = vmatpush1.bf16.msra.mxu0 0
      %1333 = vmatprep.subr.bf16.mxu0 0
      %1334 = vmatpush1.bf16.msra.mxu0 0
      %1335 = vmatprep.subr.bf16.mxu0 0
      %1336 = vmatpush1.bf16.msra.mxu0 %v1319
      %1337 = vmatprep.subr.bf16.mxu0 0
      %1338 = vmatpush2.bf16.msra.mxu0 0
      %1339 = vmatprep.subr.bf16.mxu0 0
      %1340 = vmatpush2.bf16.msra.mxu0 0
      %1341 = vmatprep.subr.bf16.mxu0 0
      %1342 = vmatpush2.bf16.msra.mxu0 0
      %1343 = vmatprep.subr.bf16.mxu0 0
      %1344 = vmatpush2.bf16.msra.mxu0 0
      %1345 = vmatprep.subr.bf16.mxu0 0
      %1346 = vmatpush2.bf16.msra.mxu0 0
      %1347 = vmatprep.subr.bf16.mxu0 0
      %1348 = vmatpush2.bf16.msra.mxu0 0
      %1349 = vmatprep.subr.bf16.mxu0 0
      %1350 = vmatpush2.bf16.msra.mxu0 0
      %1351 = vmatprep.subr.bf16.mxu0 0
      %1352 = vmatpush2.bf16.msra.mxu0 0
      %1353 = vmatprep.mubr.bf16.mxu0 0
      %1354 = vmatmul.mubr.bf16.gmra.mxu0 %v1307
      %v1355 = vpop.f32.mrf.mxu0
      %v1356 = vadd.f32 0.0, %v1355
      %v1357 = vpop.f32.mrf.mxu0
      %v1358 = vpop.f32.mrf.mxu0
      %v1359 = vadd.f32 0.0, %v1358
      %v1360 = vpop.f32.mrf.mxu0
      %1361 = vmatprep.mubr.bf16.mxu0 0
      %1362 = vmatmul.mubr.bf16.gmra.mxu0 %v1310
      %v1363 = vpop.f32.mrf.mxu0
      %v1364 = vadd.f32 0.0, %v1363
      %v1365 = vpop.f32.mrf.mxu0
      %v1366 = vpop.f32.mrf.mxu0
      %v1367 = vadd.f32 0.0, %v1366
      %v1368 = vpop.f32.mrf.mxu0
      %1369 = vmatprep.mubr.bf16.mxu0 0
      %1370 = vmatmul.mubr.bf16.gmra.mxu0 %v1313
      %v1371 = vpop.f32.mrf.mxu0
      %v1372 = vadd.f32 0.0, %v1371
      %v1373 = vpop.f32.mrf.mxu0
      %v1374 = vpop.f32.mrf.mxu0
      %v1375 = vadd.f32 0.0, %v1374
      %v1376 = vpop.f32.mrf.mxu0
      %1377 = vmatprep.mubr.bf16.mxu0 0
      %1378 = vmatmul.mubr.bf16.gmra.mxu0 %v1316
      %v1379 = vpop.f32.mrf.mxu0
      %v1380 = vadd.f32 0.0, %v1379
      %v1381 = vpop.f32.mrf.mxu0
      %v1382 = vpop.f32.mrf.mxu0
      %v1383 = vadd.f32 0.0, %v1382
      %v1384 = vpop.f32.mrf.mxu0
      %1385 = vdwg.mxu0
      %v1386 = vadd.f32 %v1286, %v1356
      %v1387 = vadd.f32 %v1287, %v1359
      %v1388 = vadd.f32 %v1288, %v1364
      %v1389 = vadd.f32 %v1289, %v1367
      %v1390 = vadd.f32 %v1290, %v1372
      %v1391 = vadd.f32 %v1291, %v1375
      %v1392 = vadd.f32 %v1292, %v1380
      %v1393 = vadd.f32 %v1293, %v1383
      %1394 = vst.msk [vmem:[#allocation2] sm:$0xff] %vm386, %v1386
      %1395 = vst.msk [vmem:[#allocation2 + $0x8] sm:$0xff] %vm386, %v1387
      %1396 = vst.msk [vmem:[#allocation2 + $0x10] sm:$0xff] %vm386, %v1388
      %1397 = vst.msk [vmem:[#allocation2 + $0x18] sm:$0xff] %vm386, %v1389
      %1398 = vst.msk [vmem:[#allocation2 + $0x20] sm:$0xff] %vm386, %v1390
      %1399 = vst.msk [vmem:[#allocation2 + $0x28] sm:$0xff] %vm386, %v1391
      %1400 = vst.msk [vmem:[#allocation2 + $0x30] sm:$0xff] %vm386, %v1392
      %1401 = vst.msk [vmem:[#allocation2 + $0x38] sm:$0xff] %vm386, %v1393
      %s1402 = scalar_lea.vmem %s221, 16
      %v1403 = vld [vmem:[%s1402] sm:$0xf]
      %v1404 = vld [vmem:[%s1402 + $0x8] sm:$0xf]
      %v1405 = vld [vmem:[%s1402 + $0x10] sm:$0xf]
      %v1406 = vld [vmem:[%s1402 + $0x18] sm:$0xf]
      %v1407 = vld [vmem:[%s1402 + $0x20] sm:$0xf]
      %v1408 = vld [vmem:[%s1402 + $0x28] sm:$0xf]
      %v1409 = vld [vmem:[%s1402 + $0x30] sm:$0xf]
      %v1410 = vld [vmem:[%s1402 + $0x38] sm:$0xf]
      %s1411 = sadd.s32 %s264, 6
      %s1412 = smul.addr %s1411, 2
      %s1413 = scalar_lea.vmem %s1, %s1412
      %v1414 = vld [vmem:[%s1413] sm:$0x3]
      %v1415 = vld [vmem:[#allocation2] sm:$0xff]
      %v1416 = vld [vmem:[#allocation2 + $0x8] sm:$0xff]
      %v1417 = vld [vmem:[#allocation2 + $0x10] sm:$0xff]
      %v1418 = vld [vmem:[#allocation2 + $0x18] sm:$0xff]
      %v1419 = vld [vmem:[#allocation2 + $0x20] sm:$0xff]
      %v1420 = vld [vmem:[#allocation2 + $0x28] sm:$0xff]
      %v1421 = vld [vmem:[#allocation2 + $0x30] sm:$0xff]
      %v1422 = vld [vmem:[#allocation2 + $0x38] sm:$0xff]
      %v1431 = vunpack.c.l.b16 %v1403
      %v1432 = vunpack.c.l.b16 %v1404
      %v1433 = vunpack.c.l.b16 %v1405
      %v1434 = vunpack.c.l.b16 %v1406
      %v1435 = vunpack.c.l.b16 %v1407
      %v1436 = vunpack.c.l.b16 %v1408
      %v1437 = vunpack.c.l.b16 %v1409
      %v1438 = vunpack.c.l.b16 %v1410
      %v1439 = vpack.c.b16 %v1432, %v1431
      %v1440 = vpack.c.b16 %v1434, %v1433
      %v1441 = vpack.c.b16 %v1436, %v1435
      %v1442 = vpack.c.b16 %v1438, %v1437
      %v1444 = vsel %vm296, %v1439, 0
      %v1447 = vsel %vm296, %v1440, 0
      %v1450 = vsel %vm296, %v1441, 0
      %v1453 = vsel %vm296, %v1442, 0
      %v1456 = vsel %vm309, %v1414, 0
      %1458 = vmatprep.subr.bf16.mxu0 0
      %1459 = vmatpush1.bf16.msra.mxu0 0
      %1460 = vmatprep.subr.bf16.mxu0 0
      %1461 = vmatpush1.bf16.msra.mxu0 0
      %1462 = vmatprep.subr.bf16.mxu0 0
      %1463 = vmatpush1.bf16.msra.mxu0 0
      %1464 = vmatprep.subr.bf16.mxu0 0
      %1465 = vmatpush1.bf16.msra.mxu0 0
      %1466 = vmatprep.subr.bf16.mxu0 0
      %1467 = vmatpush1.bf16.msra.mxu0 0
      %1468 = vmatprep.subr.bf16.mxu0 0
      %1469 = vmatpush1.bf16.msra.mxu0 0
      %1470 = vmatprep.subr.bf16.mxu0 0
      %1471 = vmatpush1.bf16.msra.mxu0 0
      %1472 = vmatprep.subr.bf16.mxu0 0
      %1473 = vmatpush1.bf16.msra.mxu0 %v1456
      %1474 = vmatprep.subr.bf16.mxu0 0
      %1475 = vmatpush2.bf16.msra.mxu0 0
      %1476 = vmatprep.subr.bf16.mxu0 0
      %1477 = vmatpush2.bf16.msra.mxu0 0
      %1478 = vmatprep.subr.bf16.mxu0 0
      %1479 = vmatpush2.bf16.msra.mxu0 0
      %1480 = vmatprep.subr.bf16.mxu0 0
      %1481 = vmatpush2.bf16.msra.mxu0 0
      %1482 = vmatprep.subr.bf16.mxu0 0
      %1483 = vmatpush2.bf16.msra.mxu0 0
      %1484 = vmatprep.subr.bf16.mxu0 0
      %1485 = vmatpush2.bf16.msra.mxu0 0
      %1486 = vmatprep.subr.bf16.mxu0 0
      %1487 = vmatpush2.bf16.msra.mxu0 0
      %1488 = vmatprep.subr.bf16.mxu0 0
      %1489 = vmatpush2.bf16.msra.mxu0 0
      %1490 = vmatprep.mubr.bf16.mxu0 0
      %1491 = vmatmul.mubr.bf16.gmra.mxu0 %v1444
      %v1492 = vpop.f32.mrf.mxu0
      %v1493 = vadd.f32 0.0, %v1492
      %v1494 = vpop.f32.mrf.mxu0
      %v1495 = vpop.f32.mrf.mxu0
      %v1496 = vadd.f32 0.0, %v1495
      %v1497 = vpop.f32.mrf.mxu0
      %1498 = vmatprep.mubr.bf16.mxu0 0
      %1499 = vmatmul.mubr.bf16.gmra.mxu0 %v1447
      %v1500 = vpop.f32.mrf.mxu0
      %v1501 = vadd.f32 0.0, %v1500
      %v1502 = vpop.f32.mrf.mxu0
      %v1503 = vpop.f32.mrf.mxu0
      %v1504 = vadd.f32 0.0, %v1503
      %v1505 = vpop.f32.mrf.mxu0
      %1506 = vmatprep.mubr.bf16.mxu0 0
      %1507 = vmatmul.mubr.bf16.gmra.mxu0 %v1450
      %v1508 = vpop.f32.mrf.mxu0
      %v1509 = vadd.f32 0.0, %v1508
      %v1510 = vpop.f32.mrf.mxu0
      %v1511 = vpop.f32.mrf.mxu0
      %v1512 = vadd.f32 0.0, %v1511
      %v1513 = vpop.f32.mrf.mxu0
      %1514 = vmatprep.mubr.bf16.mxu0 0
      %1515 = vmatmul.mubr.bf16.gmra.mxu0 %v1453
      %v1516 = vpop.f32.mrf.mxu0
      %v1517 = vadd.f32 0.0, %v1516
      %v1518 = vpop.f32.mrf.mxu0
      %v1519 = vpop.f32.mrf.mxu0
      %v1520 = vadd.f32 0.0, %v1519
      %v1521 = vpop.f32.mrf.mxu0
      %1522 = vdwg.mxu0
      %v1523 = vadd.f32 %v1415, %v1493
      %v1524 = vadd.f32 %v1416, %v1496
      %v1525 = vadd.f32 %v1417, %v1501
      %v1526 = vadd.f32 %v1418, %v1504
      %v1527 = vadd.f32 %v1419, %v1509
      %v1528 = vadd.f32 %v1420, %v1512
      %v1529 = vadd.f32 %v1421, %v1517
      %v1530 = vadd.f32 %v1422, %v1520
      %1531 = vst.msk [vmem:[#allocation2] sm:$0xff] %vm386, %v1523
      %1532 = vst.msk [vmem:[#allocation2 + $0x8] sm:$0xff] %vm386, %v1524
      %1533 = vst.msk [vmem:[#allocation2 + $0x10] sm:$0xff] %vm386, %v1525
      %1534 = vst.msk [vmem:[#allocation2 + $0x18] sm:$0xff] %vm386, %v1526
      %1535 = vst.msk [vmem:[#allocation2 + $0x20] sm:$0xff] %vm386, %v1527
      %1536 = vst.msk [vmem:[#allocation2 + $0x28] sm:$0xff] %vm386, %v1528
      %1537 = vst.msk [vmem:[#allocation2 + $0x30] sm:$0xff] %vm386, %v1529
      %1538 = vst.msk [vmem:[#allocation2 + $0x38] sm:$0xff] %vm386, %v1530
      %v1539 = vld [vmem:[%s1402] sm:$0xf]
      %v1540 = vld [vmem:[%s1402 + $0x4] sm:$0x1]
      %v1541 = vld [vmem:[%s1402 + $0x8] sm:$0xf]
      %v1542 = vld [vmem:[%s1402 + $0xc] sm:$0x1]
      %v1543 = vld [vmem:[%s1402 + $0x10] sm:$0xf]
      %v1544 = vld [vmem:[%s1402 + $0x14] sm:$0x1]
      %v1545 = vld [vmem:[%s1402 + $0x18] sm:$0xf]
      %v1546 = vld [vmem:[%s1402 + $0x1c] sm:$0x1]
      %v1547 = vld [vmem:[%s1402 + $0x20] sm:$0xf]
      %v1548 = vld [vmem:[%s1402 + $0x24] sm:$0x1]
      %v1549 = vld [vmem:[%s1402 + $0x28] sm:$0xf]
      %v1550 = vld [vmem:[%s1402 + $0x2c] sm:$0x1]
      %v1551 = vld [vmem:[%s1402 + $0x30] sm:$0xf]
      %v1552 = vld [vmem:[%s1402 + $0x34] sm:$0x1]
      %v1553 = vld [vmem:[%s1402 + $0x38] sm:$0xf]
      %v1554 = vld [vmem:[%s1402 + $0x3c] sm:$0x1]
      %v1556 = vshrl.u32 %v1539, 16
      %v1558 = vrot.slane %v1556, 4
      %v1559 = vshll.u32 %v1539, 16
      %v1561 = vrot.slane %v1559, 5
      %v1562 = vor.u32 %v1558, %v1561
      %v1563 = vrot.slane %v1562, 4
      %v1565 = vshll.u32 %v1540, 16
      %v1567 = vrot.slane %v1565, 5
      %v1568 = vsel %vm413, %v1563, %v1567
      %v1570 = vshrl.u32 %v1541, 16
      %v1572 = vrot.slane %v1570, 4
      %v1573 = vshll.u32 %v1541, 16
      %v1575 = vrot.slane %v1573, 5
      %v1576 = vor.u32 %v1572, %v1575
      %v1577 = vrot.slane %v1576, 4
      %v1579 = vshll.u32 %v1542, 16
      %v1581 = vrot.slane %v1579, 5
      %v1582 = vsel %vm413, %v1577, %v1581
      %v1584 = vshrl.u32 %v1543, 16
      %v1586 = vrot.slane %v1584, 4
      %v1587 = vshll.u32 %v1543, 16
      %v1589 = vrot.slane %v1587, 5
      %v1590 = vor.u32 %v1586, %v1589
      %v1591 = vrot.slane %v1590, 4
      %v1593 = vshll.u32 %v1544, 16
      %v1595 = vrot.slane %v1593, 5
      %v1596 = vsel %vm413, %v1591, %v1595
      %v1598 = vshrl.u32 %v1545, 16
      %v1600 = vrot.slane %v1598, 4
      %v1601 = vshll.u32 %v1545, 16
      %v1603 = vrot.slane %v1601, 5
      %v1604 = vor.u32 %v1600, %v1603
      %v1605 = vrot.slane %v1604, 4
      %v1607 = vshll.u32 %v1546, 16
      %v1609 = vrot.slane %v1607, 5
      %v1610 = vsel %vm413, %v1605, %v1609
      %v1612 = vshrl.u32 %v1547, 16
      %v1614 = vrot.slane %v1612, 4
      %v1615 = vshll.u32 %v1547, 16
      %v1617 = vrot.slane %v1615, 5
      %v1618 = vor.u32 %v1614, %v1617
      %v1619 = vrot.slane %v1618, 4
      %v1621 = vshll.u32 %v1548, 16
      %v1623 = vrot.slane %v1621, 5
      %v1624 = vsel %vm413, %v1619, %v1623
      %v1626 = vshrl.u32 %v1549, 16
      %v1628 = vrot.slane %v1626, 4
      %v1629 = vshll.u32 %v1549, 16
      %v1631 = vrot.slane %v1629, 5
      %v1632 = vor.u32 %v1628, %v1631
      %v1633 = vrot.slane %v1632, 4
      %v1635 = vshll.u32 %v1550, 16
      %v1637 = vrot.slane %v1635, 5
      %v1638 = vsel %vm413, %v1633, %v1637
      %v1640 = vshrl.u32 %v1551, 16
      %v1642 = vrot.slane %v1640, 4
      %v1643 = vshll.u32 %v1551, 16
      %v1645 = vrot.slane %v1643, 5
      %v1646 = vor.u32 %v1642, %v1645
      %v1647 = vrot.slane %v1646, 4
      %v1649 = vshll.u32 %v1552, 16
      %v1651 = vrot.slane %v1649, 5
      %v1652 = vsel %vm413, %v1647, %v1651
      %v1654 = vshrl.u32 %v1553, 16
      %v1656 = vrot.slane %v1654, 4
      %v1657 = vshll.u32 %v1553, 16
      %v1659 = vrot.slane %v1657, 5
      %v1660 = vor.u32 %v1656, %v1659
      %v1661 = vrot.slane %v1660, 4
      %v1663 = vshll.u32 %v1554, 16
      %v1665 = vrot.slane %v1663, 5
      %v1666 = vsel %vm413, %v1661, %v1665
      %s1667 = sadd.s32 %s264, 7
      %s1668 = smul.addr %s1667, 2
      %s1669 = scalar_lea.vmem %s1, %s1668
      %v1670 = vld [vmem:[%s1669] sm:$0x3]
      %v1671 = vld [vmem:[#allocation2] sm:$0xff]
      %v1672 = vld [vmem:[#allocation2 + $0x8] sm:$0xff]
      %v1673 = vld [vmem:[#allocation2 + $0x10] sm:$0xff]
      %v1674 = vld [vmem:[#allocation2 + $0x18] sm:$0xff]
      %v1675 = vld [vmem:[#allocation2 + $0x20] sm:$0xff]
      %v1676 = vld [vmem:[#allocation2 + $0x28] sm:$0xff]
      %v1677 = vld [vmem:[#allocation2 + $0x30] sm:$0xff]
      %v1678 = vld [vmem:[#allocation2 + $0x38] sm:$0xff]
      %v1679 = vunpack.c.l.b16 %v1568
      %v1680 = vunpack.c.l.b16 %v1582
      %v1681 = vunpack.c.l.b16 %v1596
      %v1682 = vunpack.c.l.b16 %v1610
      %v1683 = vunpack.c.l.b16 %v1624
      %v1684 = vunpack.c.l.b16 %v1638
      %v1685 = vunpack.c.l.b16 %v1652
      %v1686 = vunpack.c.l.b16 %v1666
      %v1687 = vpack.c.b16 %v1680, %v1679
      %v1688 = vpack.c.b16 %v1682, %v1681
      %v1689 = vpack.c.b16 %v1684, %v1683
      %v1690 = vpack.c.b16 %v1686, %v1685
      %v1692 = vsel %vm296, %v1687, 0
      %v1695 = vsel %vm296, %v1688, 0
      %v1698 = vsel %vm296, %v1689, 0
      %v1701 = vsel %vm296, %v1690, 0
      %v1704 = vsel %vm309, %v1670, 0
      %1706 = vmatprep.subr.bf16.mxu0 0
      %1707 = vmatpush1.bf16.msra.mxu0 0
      %1708 = vmatprep.subr.bf16.mxu0 0
      %1709 = vmatpush1.bf16.msra.mxu0 0
      %1710 = vmatprep.subr.bf16.mxu0 0
      %1711 = vmatpush1.bf16.msra.mxu0 0
      %1712 = vmatprep.subr.bf16.mxu0 0
      %1713 = vmatpush1.bf16.msra.mxu0 0
      %1714 = vmatprep.subr.bf16.mxu0 0
      %1715 = vmatpush1.bf16.msra.mxu0 0
      %1716 = vmatprep.subr.bf16.mxu0 0
      %1717 = vmatpush1.bf16.msra.mxu0 0
      %1718 = vmatprep.subr.bf16.mxu0 0
      %1719 = vmatpush1.bf16.msra.mxu0 0
      %1720 = vmatprep.subr.bf16.mxu0 0
      %1721 = vmatpush1.bf16.msra.mxu0 %v1704
      %1722 = vmatprep.subr.bf16.mxu0 0
      %1723 = vmatpush2.bf16.msra.mxu0 0
      %1724 = vmatprep.subr.bf16.mxu0 0
      %1725 = vmatpush2.bf16.msra.mxu0 0
      %1726 = vmatprep.subr.bf16.mxu0 0
      %1727 = vmatpush2.bf16.msra.mxu0 0
      %1728 = vmatprep.subr.bf16.mxu0 0
      %1729 = vmatpush2.bf16.msra.mxu0 0
      %1730 = vmatprep.subr.bf16.mxu0 0
      %1731 = vmatpush2.bf16.msra.mxu0 0
      %1732 = vmatprep.subr.bf16.mxu0 0
      %1733 = vmatpush2.bf16.msra.mxu0 0
      %1734 = vmatprep.subr.bf16.mxu0 0
      %1735 = vmatpush2.bf16.msra.mxu0 0
      %1736 = vmatprep.subr.bf16.mxu0 0
      %1737 = vmatpush2.bf16.msra.mxu0 0
      %1738 = vmatprep.mubr.bf16.mxu0 0
      %1739 = vmatmul.mubr.bf16.gmra.mxu0 %v1692
      %v1740 = vpop.f32.mrf.mxu0
      %v1741 = vadd.f32 0.0, %v1740
      %v1742 = vpop.f32.mrf.mxu0
      %v1743 = vpop.f32.mrf.mxu0
      %v1744 = vadd.f32 0.0, %v1743
      %v1745 = vpop.f32.mrf.mxu0
      %1746 = vmatprep.mubr.bf16.mxu0 0
      %1747 = vmatmul.mubr.bf16.gmra.mxu0 %v1695
      %v1748 = vpop.f32.mrf.mxu0
      %v1749 = vadd.f32 0.0, %v1748
      %v1750 = vpop.f32.mrf.mxu0
      %v1751 = vpop.f32.mrf.mxu0
      %v1752 = vadd.f32 0.0, %v1751
      %v1753 = vpop.f32.mrf.mxu0
      %1754 = vmatprep.mubr.bf16.mxu0 0
      %1755 = vmatmul.mubr.bf16.gmra.mxu0 %v1698
      %v1756 = vpop.f32.mrf.mxu0
      %v1757 = vadd.f32 0.0, %v1756
      %v1758 = vpop.f32.mrf.mxu0
      %v1759 = vpop.f32.mrf.mxu0
      %v1760 = vadd.f32 0.0, %v1759
      %v1761 = vpop.f32.mrf.mxu0
      %1762 = vmatprep.mubr.bf16.mxu0 0
      %1763 = vmatmul.mubr.bf16.gmra.mxu0 %v1701
      %v1764 = vpop.f32.mrf.mxu0
      %v1765 = vadd.f32 0.0, %v1764
      %v1766 = vpop.f32.mrf.mxu0
      %v1767 = vpop.f32.mrf.mxu0
      %v1768 = vadd.f32 0.0, %v1767
      %v1769 = vpop.f32.mrf.mxu0
      %1770 = vdwg.mxu0
      %v1771 = vadd.f32 %v1671, %v1741
      %v1772 = vadd.f32 %v1672, %v1744
      %v1773 = vadd.f32 %v1673, %v1749
      %v1774 = vadd.f32 %v1674, %v1752
      %v1775 = vadd.f32 %v1675, %v1757
      %v1776 = vadd.f32 %v1676, %v1760
      %v1777 = vadd.f32 %v1677, %v1765
      %v1778 = vadd.f32 %v1678, %v1768
      %1779 = vst.msk [vmem:[#allocation2] sm:$0xff] %vm386, %v1771
      %1780 = vst.msk [vmem:[#allocation2 + $0x8] sm:$0xff] %vm386, %v1772
      %1781 = vst.msk [vmem:[#allocation2 + $0x10] sm:$0xff] %vm386, %v1773
      %1782 = vst.msk [vmem:[#allocation2 + $0x18] sm:$0xff] %vm386, %v1774
      %1783 = vst.msk [vmem:[#allocation2 + $0x20] sm:$0xff] %vm386, %v1775
      %1784 = vst.msk [vmem:[#allocation2 + $0x28] sm:$0xff] %vm386, %v1776
      %1785 = vst.msk [vmem:[#allocation2 + $0x30] sm:$0xff] %vm386, %v1777
      %1786 = vst.msk [vmem:[#allocation2 + $0x38] sm:$0xff] %vm386, %v1778
      %v1787 = vld [vmem:[%s1402] sm:$0xe]
      %v1788 = vld [vmem:[%s1402 + $0x4] sm:$0x1]
      %v1789 = vld [vmem:[%s1402 + $0x8] sm:$0xe]
      %v1790 = vld [vmem:[%s1402 + $0xc] sm:$0x1]
      %v1791 = vld [vmem:[%s1402 + $0x10] sm:$0xe]
      %v1792 = vld [vmem:[%s1402 + $0x14] sm:$0x1]
      %v1793 = vld [vmem:[%s1402 + $0x18] sm:$0xe]
      %v1794 = vld [vmem:[%s1402 + $0x1c] sm:$0x1]
      %v1795 = vld [vmem:[%s1402 + $0x20] sm:$0xe]
      %v1796 = vld [vmem:[%s1402 + $0x24] sm:$0x1]
      %v1797 = vld [vmem:[%s1402 + $0x28] sm:$0xe]
      %v1798 = vld [vmem:[%s1402 + $0x2c] sm:$0x1]
      %v1799 = vld [vmem:[%s1402 + $0x30] sm:$0xe]
      %v1800 = vld [vmem:[%s1402 + $0x34] sm:$0x1]
      %v1801 = vld [vmem:[%s1402 + $0x38] sm:$0xe]
      %v1802 = vld [vmem:[%s1402 + $0x3c] sm:$0x1]
      %v1819 = vrot.slane %v1787, 5
      %v1820 = vrot.slane %v1819, 4
      %v1821 = vrot.slane %v1788, 5
      %v1822 = vsel %vm680, %v1820, %v1821
      %v1823 = vrot.slane %v1789, 5
      %v1824 = vrot.slane %v1823, 4
      %v1825 = vrot.slane %v1790, 5
      %v1826 = vsel %vm680, %v1824, %v1825
      %v1827 = vrot.slane %v1791, 5
      %v1828 = vrot.slane %v1827, 4
      %v1829 = vrot.slane %v1792, 5
      %v1830 = vsel %vm680, %v1828, %v1829
      %v1831 = vrot.slane %v1793, 5
      %v1832 = vrot.slane %v1831, 4
      %v1833 = vrot.slane %v1794, 5
      %v1834 = vsel %vm680, %v1832, %v1833
      %v1835 = vrot.slane %v1795, 5
      %v1836 = vrot.slane %v1835, 4
      %v1837 = vrot.slane %v1796, 5
      %v1838 = vsel %vm680, %v1836, %v1837
      %v1839 = vrot.slane %v1797, 5
      %v1840 = vrot.slane %v1839, 4
      %v1841 = vrot.slane %v1798, 5
      %v1842 = vsel %vm680, %v1840, %v1841
      %v1843 = vrot.slane %v1799, 5
      %v1844 = vrot.slane %v1843, 4
      %v1845 = vrot.slane %v1800, 5
      %v1846 = vsel %vm680, %v1844, %v1845
      %v1847 = vrot.slane %v1801, 5
      %v1848 = vrot.slane %v1847, 4
      %v1849 = vrot.slane %v1802, 5
      %v1850 = vsel %vm680, %v1848, %v1849
      %s1851 = sadd.s32 %s264, 8
      %s1852 = smul.addr %s1851, 2
      %s1853 = scalar_lea.vmem %s1, %s1852
      %v1854 = vld [vmem:[%s1853] sm:$0x3]
      %v1855 = vld [vmem:[#allocation2] sm:$0xff]
      %v1856 = vld [vmem:[#allocation2 + $0x8] sm:$0xff]
      %v1857 = vld [vmem:[#allocation2 + $0x10] sm:$0xff]
      %v1858 = vld [vmem:[#allocation2 + $0x18] sm:$0xff]
      %v1859 = vld [vmem:[#allocation2 + $0x20] sm:$0xff]
      %v1860 = vld [vmem:[#allocation2 + $0x28] sm:$0xff]
      %v1861 = vld [vmem:[#allocation2 + $0x30] sm:$0xff]
      %v1862 = vld [vmem:[#allocation2 + $0x38] sm:$0xff]
      %v1863 = vunpack.c.l.b16 %v1822
      %v1864 = vunpack.c.l.b16 %v1826
      %v1865 = vunpack.c.l.b16 %v1830
      %v1866 = vunpack.c.l.b16 %v1834
      %v1867 = vunpack.c.l.b16 %v1838
      %v1868 = vunpack.c.l.b16 %v1842
      %v1869 = vunpack.c.l.b16 %v1846
      %v1870 = vunpack.c.l.b16 %v1850
      %v1871 = vpack.c.b16 %v1864, %v1863
      %v1872 = vpack.c.b16 %v1866, %v1865
      %v1873 = vpack.c.b16 %v1868, %v1867
      %v1874 = vpack.c.b16 %v1870, %v1869
      %v1876 = vsel %vm296, %v1871, 0
      %v1879 = vsel %vm296, %v1872, 0
      %v1882 = vsel %vm296, %v1873, 0
      %v1885 = vsel %vm296, %v1874, 0
      %v1888 = vsel %vm309, %v1854, 0
      %1890 = vmatprep.subr.bf16.mxu0 0
      %1891 = vmatpush1.bf16.msra.mxu0 0
      %1892 = vmatprep.subr.bf16.mxu0 0
      %1893 = vmatpush1.bf16.msra.mxu0 0
      %1894 = vmatprep.subr.bf16.mxu0 0
      %1895 = vmatpush1.bf16.msra.mxu0 0
      %1896 = vmatprep.subr.bf16.mxu0 0
      %1897 = vmatpush1.bf16.msra.mxu0 0
      %1898 = vmatprep.subr.bf16.mxu0 0
      %1899 = vmatpush1.bf16.msra.mxu0 0
      %1900 = vmatprep.subr.bf16.mxu0 0
      %1901 = vmatpush1.bf16.msra.mxu0 0
      %1902 = vmatprep.subr.bf16.mxu0 0
      %1903 = vmatpush1.bf16.msra.mxu0 0
      %1904 = vmatprep.subr.bf16.mxu0 0
      %1905 = vmatpush1.bf16.msra.mxu0 %v1888
      %1906 = vmatprep.subr.bf16.mxu0 0
      %1907 = vmatpush2.bf16.msra.mxu0 0
      %1908 = vmatprep.subr.bf16.mxu0 0
      %1909 = vmatpush2.bf16.msra.mxu0 0
      %1910 = vmatprep.subr.bf16.mxu0 0
      %1911 = vmatpush2.bf16.msra.mxu0 0
      %1912 = vmatprep.subr.bf16.mxu0 0
      %1913 = vmatpush2.bf16.msra.mxu0 0
      %1914 = vmatprep.subr.bf16.mxu0 0
      %1915 = vmatpush2.bf16.msra.mxu0 0
      %1916 = vmatprep.subr.bf16.mxu0 0
      %1917 = vmatpush2.bf16.msra.mxu0 0
      %1918 = vmatprep.subr.bf16.mxu0 0
      %1919 = vmatpush2.bf16.msra.mxu0 0
      %1920 = vmatprep.subr.bf16.mxu0 0
      %1921 = vmatpush2.bf16.msra.mxu0 0
      %1922 = vmatprep.mubr.bf16.mxu0 0
      %1923 = vmatmul.mubr.bf16.gmra.mxu0 %v1876
      %v1924 = vpop.f32.mrf.mxu0
      %v1925 = vadd.f32 0.0, %v1924
      %v1926 = vpop.f32.mrf.mxu0
      %v1927 = vpop.f32.mrf.mxu0
      %v1928 = vadd.f32 0.0, %v1927
      %v1929 = vpop.f32.mrf.mxu0
      %1930 = vmatprep.mubr.bf16.mxu0 0
      %1931 = vmatmul.mubr.bf16.gmra.mxu0 %v1879
      %v1932 = vpop.f32.mrf.mxu0
      %v1933 = vadd.f32 0.0, %v1932
      %v1934 = vpop.f32.mrf.mxu0
      %v1935 = vpop.f32.mrf.mxu0
      %v1936 = vadd.f32 0.0, %v1935
      %v1937 = vpop.f32.mrf.mxu0
      %1938 = vmatprep.mubr.bf16.mxu0 0
      %1939 = vmatmul.mubr.bf16.gmra.mxu0 %v1882
      %v1940 = vpop.f32.mrf.mxu0
      %v1941 = vadd.f32 0.0, %v1940
      %v1942 = vpop.f32.mrf.mxu0
      %v1943 = vpop.f32.mrf.mxu0
      %v1944 = vadd.f32 0.0, %v1943
      %v1945 = vpop.f32.mrf.mxu0
      %1946 = vmatprep.mubr.bf16.mxu0 0
      %1947 = vmatmul.mubr.bf16.gmra.mxu0 %v1885
      %v1948 = vpop.f32.mrf.mxu0
      %v1949 = vadd.f32 0.0, %v1948
      %v1950 = vpop.f32.mrf.mxu0
      %v1951 = vpop.f32.mrf.mxu0
      %v1952 = vadd.f32 0.0, %v1951
      %v1953 = vpop.f32.mrf.mxu0
      %1954 = vdwg.mxu0
      %v1955 = vadd.f32 %v1855, %v1925
      %v1956 = vadd.f32 %v1856, %v1928
      %v1957 = vadd.f32 %v1857, %v1933
      %v1958 = vadd.f32 %v1858, %v1936
      %v1959 = vadd.f32 %v1859, %v1941
      %v1960 = vadd.f32 %v1860, %v1944
      %v1961 = vadd.f32 %v1861, %v1949
      %v1962 = vadd.f32 %v1862, %v1952
      %1963 = vst.msk [vmem:[#allocation2] sm:$0xff] %vm386, %v1955
      %1964 = vst.msk [vmem:[#allocation2 + $0x8] sm:$0xff] %vm386, %v1956
      %1965 = vst.msk [vmem:[#allocation2 + $0x10] sm:$0xff] %vm386, %v1957
      %1966 = vst.msk [vmem:[#allocation2 + $0x18] sm:$0xff] %vm386, %v1958
      %1967 = vst.msk [vmem:[#allocation2 + $0x20] sm:$0xff] %vm386, %v1959
      %1968 = vst.msk [vmem:[#allocation2 + $0x28] sm:$0xff] %vm386, %v1960
      %1969 = vst.msk [vmem:[#allocation2 + $0x30] sm:$0xff] %vm386, %v1961
      %1970 = vst.msk [vmem:[#allocation2 + $0x38] sm:$0xff] %vm386, %v1962
      %p1971 = scmp.eq.s32.totalorder %s22, 2
      // Predicated region
      $region33: #{unit3d_forward.2} parent=27 // pred_check
        %p1972 = pneg %p1971
      $region34: #{unit3d_forward.2} parent=27 // pred_check_branch
        %1974 = sbr.rel (%p1972) target = $region36
      $region35: #{unit3d_forward.2} parent=27 // pred_region
        %v1975 = vld [vmem:[#allocation2] sm:$0xff]
        %v1976 = vld [vmem:[#allocation2 + $0x8] sm:$0xff]
        %v1977 = vld [vmem:[#allocation2 + $0x10] sm:$0xff]
        %v1978 = vld [vmem:[#allocation2 + $0x18] sm:$0xff]
        %v1979 = vld [vmem:[#allocation2 + $0x20] sm:$0xff]
        %v1980 = vld [vmem:[#allocation2 + $0x28] sm:$0xff]
        %v1981 = vld [vmem:[#allocation2 + $0x30] sm:$0xff]
        %v1982 = vld [vmem:[#allocation2 + $0x38] sm:$0xff]
        %v1983 = vsel %vm386, %v1975, 0.0
        %v1984 = vsel %vm386, %v1976, 0.0
        %v1985 = vadd.f32 %v1983, %v1984
        %v1986 = vsel %vm386, %v1977, 0.0
        %v1987 = vadd.f32 %v1985, %v1986
        %v1988 = vsel %vm386, %v1978, 0.0
        %v1989 = vadd.f32 %v1987, %v1988
        %v1990 = vsel %vm386, %v1979, 0.0
        %v1991 = vadd.f32 %v1989, %v1990
        %v1992 = vsel %vm386, %v1980, 0.0
        %v1993 = vadd.f32 %v1991, %v1992
        %v1994 = vsel %vm386, %v1981, 0.0
        %v1995 = vadd.f32 %v1993, %v1994
        %v1996 = vsel %vm386, %v1982, 0.0
        %v1997 = vadd.f32 %v1995, %v1996
        %v1998 = vrot.slane %v1997, 4
        %v1999 = vadd.f32 %v1997, %v1998
        %v2000 = vrot.slane %v1999, 2
        %v2001 = vadd.f32 %v1999, %v2000
        %v2002 = vrot.slane %v2001, 1
        %v2003 = vadd.f32 %v2001, %v2002
        %v2004 = vmul.f32 %v2003, 0.015625
        %v2005 = vsub.f32 %v1975, %v2004
        %v2006 = vsub.f32 %v1976, %v2004
        %v2007 = vsub.f32 %v1977, %v2004
        %v2008 = vsub.f32 %v1978, %v2004
        %v2009 = vsub.f32 %v1979, %v2004
        %v2010 = vsub.f32 %v1980, %v2004
        %v2011 = vsub.f32 %v1981, %v2004
        %v2012 = vsub.f32 %v1982, %v2004
        %vm2013 = vcmask 57344
        %2014 = vst.msk [vmem:[%s239] sm:$0x1] %vm2013, %v2003
        %v2015 = vmul.f32 %v2005, %v2005
        %v2016 = vmul.f32 %v2006, %v2006
        %v2017 = vmul.f32 %v2007, %v2007
        %v2018 = vmul.f32 %v2008, %v2008
        %v2019 = vmul.f32 %v2009, %v2009
        %v2020 = vmul.f32 %v2010, %v2010
        %v2021 = vmul.f32 %v2011, %v2011
        %v2022 = vmul.f32 %v2012, %v2012
        %v2023 = vsel %vm386, %v2015, 0.0
        %v2024 = vsel %vm386, %v2016, 0.0
        %v2025 = vadd.f32 %v2023, %v2024
        %v2026 = vsel %vm386, %v2017, 0.0
        %v2027 = vadd.f32 %v2025, %v2026
        %v2028 = vsel %vm386, %v2018, 0.0
        %v2029 = vadd.f32 %v2027, %v2028
        %v2030 = vsel %vm386, %v2019, 0.0
        %v2031 = vadd.f32 %v2029, %v2030
        %v2032 = vsel %vm386, %v2020, 0.0
        %v2033 = vadd.f32 %v2031, %v2032
        %v2034 = vsel %vm386, %v2021, 0.0
        %v2035 = vadd.f32 %v2033, %v2034
        %v2036 = vsel %vm386, %v2022, 0.0
        %v2037 = vadd.f32 %v2035, %v2036
        %v2038 = vrot.slane %v2037, 4
        %v2039 = vadd.f32 %v2037, %v2038
        %v2040 = vrot.slane %v2039, 2
        %v2041 = vadd.f32 %v2039, %v2040
        %v2042 = vrot.slane %v2041, 1
        %v2043 = vadd.f32 %v2041, %v2042
        %2044 = vst.msk [vmem:[%s239 + $0x1] sm:$0x1] %vm2013, %v2043
        %v2045 = vpack.c.bf16 %v1976, %v1975
        %v2046 = vpack.c.bf16 %v1978, %v1977
        %v2047 = vpack.c.bf16 %v1980, %v1979
        %v2048 = vpack.c.bf16 %v1982, %v1981
        %v2053 = vunpack.c.l.b16 %v2045
        %v2054 = vunpack.c.h.b16 %v2045
        %v2055 = vunpack.c.l.b16 %v2046
        %v2056 = vunpack.c.h.b16 %v2046
        %v2057 = vunpack.c.l.b16 %v2047
        %v2058 = vunpack.c.h.b16 %v2047
        %v2059 = vunpack.c.l.b16 %v2048
        %v2060 = vunpack.c.h.b16 %v2048
        %v2061 = vpack.c.b16 %v2053, %v2053
        %v2062 = vpack.c.b16 %v2054, %v2054
        %v2063 = vpack.c.b16 %v2055, %v2055
        %v2064 = vpack.c.b16 %v2056, %v2056
        %v2065 = vpack.c.b16 %v2057, %v2057
        %v2066 = vpack.c.b16 %v2058, %v2058
        %v2067 = vpack.c.b16 %v2059, %v2059
        %v2068 = vpack.c.b16 %v2060, %v2060
        %vm2077 = vcmask 60416
        %2078 = vst.msk [vmem:[%s231] sm:$0xf] %vm2077, %v2061
        %2079 = vst.msk [vmem:[%s231 + $0x4] sm:$0xf] %vm2077, %v2062
        %2080 = vst.msk [vmem:[%s231 + $0x8] sm:$0xf] %vm2077, %v2063
        %2081 = vst.msk [vmem:[%s231 + $0xc] sm:$0xf] %vm2077, %v2064
        %2082 = vst.msk [vmem:[%s231 + $0x10] sm:$0xf] %vm2077, %v2065
        %2083 = vst.msk [vmem:[%s231 + $0x14] sm:$0xf] %vm2077, %v2066
        %2084 = vst.msk [vmem:[%s231 + $0x18] sm:$0xf] %vm2077, %v2067
        %2085 = vst.msk [vmem:[%s231 + $0x1c] sm:$0xf] %vm2077, %v2068
      $region36: #{unit3d_forward.2} parent=27 // pred_fallthru
        _
      %s2086 = smul.u32 %s20, 4
      %s2087 = sadd.s32 %s2086, %s21
      %p2088 = scmp.lt.s32.totalorder %s2087, 7
      %s2089 = scalar_select %p2088, %s2087, 7
      %s2090 = smul.addr %s2089, 8
      %s2091 = smul.addr %s2090, 4
      %s2092 = scalar_lea.vmem %s2, %s2091
      %s2093 = smul.u32 %s20, 4
      %s2094 = sadd.s32 %s2093, %s21
      %p2095 = scmp.lt.s32.totalorder %s2094, 7
      %s2096 = scalar_select %p2095, %s2094, 7
      %s2097 = smul.addr %s2096, 2
      %s2098 = scalar_lea.vmem %s3, %s2097
      // Predicated region
      $region37: #{unit3d_forward.2} parent=27 // pred_check
        %p2099 = pneg %p109
      $region38: #{unit3d_forward.2} parent=27 // pred_check_branch
        %2101 = sbr.rel (%p2099) target = $region40
      $region39: #{unit3d_forward.2} parent=27 // pred_region
        %s2102 = smul.u32 %s20, 4
        %s2103 = sadd.s32 %s2102, %s21
      $region40: #{unit3d_forward.2} parent=27 // pred_fallthru
        _
      // Predicated region
      $region41: #{unit3d_forward.2} parent=27 // pred_check
        %p2104 = pneg %p139
      $region42: #{unit3d_forward.2} parent=27 // pred_check_branch
        %2106 = sbr.rel (%p2104) target = $region44
      $region43: #{unit3d_forward.2} parent=27 // pred_region
        %s2107 = smul.u32 %s20, 4
        %s2108 = sadd.s32 %s2107, %s21
      $region44: #{unit3d_forward.2} parent=27 // pred_fallthru
        _
    $region28: #{unit3d_forward.2} parent=5 // pred_fallthru
      _
    %p2109 = scmp.le.s32.totalorder 2, %s10
    // Predicated region
    $region45: #{unit3d_forward.2} parent=5 // pred_check
      %p2110 = pneg %p2109
    $region46: #{unit3d_forward.2} parent=5 // pred_check_branch
      %2112 = sbr.rel (%p2110) target = $region48
    $region47: #{unit3d_forward.2} parent=5 // pred_region
      %s2113 = ssub.s32 %s10, 2
      // Predicated region
      $region49: #{unit3d_forward.2} parent=47 // pred_check
        %p2114 = pneg %p115
      $region50: #{unit3d_forward.2} parent=47 // pred_check_branch
        %2116 = sbr.rel (%p2114) target = $region52
      $region51: #{unit3d_forward.2} parent=47 // pred_region
        %s2117 = smul.u32 %s23, 4
        %s2118 = sadd.s32 %s2117, %s24
        %p2119 = scmp.lt.s32.totalorder %s2118, 7
        %s2120 = scalar_select %p2119, %s2118, 7
        %s2121 = smul.addr %s2120, 8
        %s2122 = smul.addr %s2121, 4
        %s2123 = scalar_lea.vmem %s2, %s2122
      $region52: #{unit3d_forward.2} parent=47 // pred_fallthru
        _
      // Predicated region
      $region53: #{unit3d_forward.2} parent=47 // pred_check
        %p2124 = pneg %p145
      $region54: #{unit3d_forward.2} parent=47 // pred_check_branch
        %2126 = sbr.rel (%p2124) target = $region56
      $region55: #{unit3d_forward.2} parent=47 // pred_region
        %s2127 = smul.u32 %s23, 4
        %s2128 = sadd.s32 %s2127, %s24
        %p2129 = scmp.lt.s32.totalorder %s2128, 7
        %s2130 = scalar_select %p2129, %s2128, 7
        %s2131 = smul.addr %s2130, 2
        %s2132 = scalar_lea.vmem %s3, %s2131
      $region56: #{unit3d_forward.2} parent=47 // pred_fallthru
        _
    $region48: #{unit3d_forward.2} parent=5 // pred_fallthru
      _
  $region6: #{unit3d_forward.2} parent=0 // loop_footer
    %s14 = sadd.s32 1, %s10
  $region7: #{unit3d_forward.2} parent=0 // loop_footer_branch
    %9 = sbr.rel target = $region3
  $region8: #{unit3d_forward.2} parent=0 // loop_exit
    _

</llo_original>
